<compile_context>
chip_gen: v6e
topology: v6e:2x2x1
jax: 0.10.0
libtpu: 0.0.40
codegen_flags: <defaults>
</compile_context>

<pallas_src>
import functools

import jax
import jax.numpy as jnp
from jax.experimental import pallas as pl
from jax.experimental.pallas import tpu as pltpu


_SUPPORTED = ("sum", "mean", "min", "max")


def _round_up(x, m):
    return (x + m - 1) // m * m


def _pick_tiles(N, M, elem_bytes, vmem_budget=12 * 1024 * 1024):
    """Pick lane-dense (tn, tm) output tiles.

    `elem_bytes` ~ double-buffered pipeline bytes per (tn*tm) output element.
    Keeps the working set comfortably under the scoped-VMEM default of every
    TPU generation and tries to keep >= 2 grid steps along a parallel axis so
    a two-TensorCore chip (v7x) gets work on both cores.
    """
    tm = min(_round_up(M, 128), 1024)            # lane-dense, unmasked stores
    tn = min(_round_up(N, 8), 256)
    while tn > 8 and tn * tm * elem_bytes > vmem_budget:
        tn = max(8, _round_up(tn // 2, 8))
    if _round_up(N, tn) == tn and _round_up(M, tm) == tm and N > 8:
        tn = max(8, _round_up((N + 1) // 2, 8))  # avoid a 1x1 grid (megacore)
    return tn, tm


# ---------------------------------------------------------------------------
# Fused kernel: compute the three sub-costs AND the weighted K-reduction per
# (tn, tm) tile.  HBM traffic = read two small feature matrices + write (N, M).
# ---------------------------------------------------------------------------
def _fused_reduce_kernel(w_ref, cs_ref, dst_ref, out_ref, *, method, dim):
    cs = cs_ref[...]      # (tn, D)  float32
    dst = dst_ref[...]    # (D, tm)  float32

    # MXU: cs @ ds^T for this tile.
    dot = jnp.dot(cs, dst, preferred_element_type=jnp.float32)       # (tn, tm)

    # Squared L2 via ||a||^2 - 2 a.b + ||b||^2 (reuses the MXU result).
    cs_sq = jnp.sum(cs * cs, axis=1, keepdims=True)                  # (tn, 1)
    ds_sq = jnp.sum(dst * dst, axis=0, keepdims=True)                # (1, tm)
    cost_l2 = cs_sq - 2.0 * dot + ds_sq
    cost_nd = -dot

    # VPU: L1 distance, accumulated over the small static D axis (unrolled).
    l1 = jnp.abs(cs[:, 0:1] - dst[0:1, :])
    for d in range(1, dim):
        l1 = l1 + jnp.abs(cs[:, d:d + 1] - dst[d:d + 1, :])

    c0 = cost_l2 * w_ref[0]
    c1 = cost_nd * w_ref[1]
    c2 = l1 * w_ref[2]
    if method in ("sum", "mean"):      # mean: 1/K folded into weights on host
        out = c0 + c1 + c2
    elif method == "min":
        out = jnp.minimum(jnp.minimum(c0, c1), c2)
    elif method == "max":
        out = jnp.maximum(jnp.maximum(c0, c1), c2)
    else:
        # TODO(synk): Reduction.PRODUCT raises NotImplementedError in the
        # reference `_reduce_stack`, so it is intentionally not implemented.
        raise NotImplementedError(f"Reduction '{method}' not implemented")
    out_ref[...] = out


def reduce_module_forward(cs_feat, ds_feat, weights, method):
    """Mirror of Reduce.forward with three synthetic sub-costs fused in."""
    if method not in _SUPPORTED:
        raise NotImplementedError(f"Reduction '{method}' not implemented")
    N, D = cs_feat.shape
    M, _ = ds_feat.shape
    K = 3
    w = weights.astype(jnp.float32)
    if method == "mean":
        w = w / K                               # fold 1/K into scalar weights

    tn, tm = _pick_tiles(N, M, elem_bytes=2 * 4)
    Np, Mp = _round_up(N, tn), _round_up(M, tm)
    cs_p = jnp.pad(cs_feat.astype(jnp.float32), ((0, Np - N), (0, 0)))
    ds_t = jnp.pad(ds_feat.astype(jnp.float32), ((0, Mp - M), (0, 0))).T  # (D, Mp)

    kernel = functools.partial(_fused_reduce_kernel, method=method, dim=D)
    out = pl.pallas_call(
        kernel,
        out_shape=jax.ShapeDtypeStruct((Np, Mp), jnp.float32),
        grid_spec=pltpu.PrefetchScalarGridSpec(
            num_scalar_prefetch=1,              # weights -> SMEM
            grid=(Np // tn, Mp // tm),
            in_specs=[
                pl.BlockSpec((tn, D), lambda i, j, w: (i, 0)),
                pl.BlockSpec((D, tm), lambda i, j, w: (0, j)),
            ],
            out_specs=pl.BlockSpec((tn, tm), lambda i, j, w: (i, j)),
        ),
        compiler_params=pltpu.CompilerParams(
            dimension_semantics=("parallel", "parallel")),
    )(w, cs_p, ds_t)
    return out[:N, :M]


# ---------------------------------------------------------------------------
# Generic kernel: weighted reduction of an already-stacked (K, N, M) tensor
# (literal translation of `_reduce_stack` for arbitrary cost stacks).
# ---------------------------------------------------------------------------
def _reduce_stack_kernel(w_ref, costs_ref, out_ref, *, method, num_costs):
    acc = costs_ref[0] * w_ref[0]
    for k in range(1, num_costs):               # K small & static -> unrolled
        c = costs_ref[k] * w_ref[k]
        if method in ("sum", "mean"):
            acc = acc + c
        elif method == "min":
            acc = jnp.minimum(acc, c)
        elif method == "max":
            acc = jnp.maximum(acc, c)
        else:
            raise NotImplementedError(f"Reduction '{method}' not implemented")
    out_ref[...] = acc


def reduce_costs(stacked_costs, weights, method="sum"):
    """(K, N, M) costs + (K,) weights -> (N, M) weighted reduction."""
    if method not in _SUPPORTED:
        raise NotImplementedError(f"Reduction '{method}' not implemented")
    K, N, M = stacked_costs.shape
    w = weights.astype(jnp.float32)
    if method == "mean":
        w = w / K                               # fold 1/K into scalar weights

    tn, tm = _pick_tiles(N, M, elem_bytes=2 * (K + 1) * 4)
    Np, Mp = _round_up(N, tn), _round_up(M, tm)
    if (Np, Mp) != (N, M):
        stacked_costs = jnp.pad(stacked_costs,
                                ((0, 0), (0, Np - N), (0, Mp - M)))

    kernel = functools.partial(_reduce_stack_kernel, method=method, num_costs=K)
    out = pl.pallas_call(
        kernel,
        out_shape=jax.ShapeDtypeStruct((Np, Mp), stacked_costs.dtype),
        grid_spec=pltpu.PrefetchScalarGridSpec(
            num_scalar_prefetch=1,              # weights -> SMEM
            grid=(Np // tn, Mp // tm),
            in_specs=[pl.BlockSpec((K, tn, tm), lambda i, j, w: (0, i, j))],
            out_specs=pl.BlockSpec((tn, tm), lambda i, j, w: (i, j)),
        ),
        compiler_params=pltpu.CompilerParams(
            dimension_semantics=("parallel", "parallel")),
    )(w, stacked_costs)
    return out[:N, :M]


# ---- pure-JAX reference (mirrors the torch module) --------------------------
def _cost_l2(cs_feat, ds_feat):
    d = cs_feat[:, None, :] - ds_feat[None, :, :]
    return jnp.sum(d * d, axis=-1)


def _cost_neg_dot(cs_feat, ds_feat):
    return -(cs_feat @ ds_feat.T)


def _cost_abs(cs_feat, ds_feat):
    return jnp.sum(jnp.abs(cs_feat[:, None, :] - ds_feat[None, :, :]), axis=-1)


def _reference(stacked, weights, method):
    c = stacked * weights[:, None, None]
    if method == "sum":
        return c.sum(0)
    if method == "mean":
        return c.mean(0)
    if method == "min":
        return c.min(0)
    if method == "max":
        return c.max(0)
    raise NotImplementedError


if __name__ == "__main__":
    key = jax.random.PRNGKey(0)
    k1, k2 = jax.random.split(key)

    # Non-multiples of (8, 128) on purpose: exercised via internal padding.
    N, M, D = 100, 200, 32        # N tracklets, M detections, D-dim embeddings
    cs_feat = jax.random.normal(k1, (N, D), dtype=jnp.float32)
    ds_feat = jax.random.normal(k2, (M, D), dtype=jnp.float32)
    weights = jnp.asarray([1.0, 0.5, 2.0], dtype=jnp.float32)

    stacked = jnp.stack(
        [_cost_l2(cs_feat, ds_feat),
         _cost_neg_dot(cs_feat, ds_feat),
         _cost_abs(cs_feat, ds_feat)]
    ).astype(jnp.float32)

    ok = True
    for method in ("sum", "mean", "min", "max"):
        ref = _reference(stacked, weights, method)

        # Fused path (feature matrices in, reduced costs out).
        out_fused = jax.block_until_ready(
            reduce_module_forward(cs_feat, ds_feat, weights, method))
        if not bool(jnp.allclose(out_fused, ref, rtol=1e-4, atol=1e-3)):
            print(f"FUSED MISMATCH for method={method}")
            ok = False

        # Generic stacked-reduction path (literal Reduce._reduce_stack).
        out_gen = jax.block_until_ready(reduce_costs(stacked, weights, method))
        if not bool(jnp.allclose(out_gen, ref, rtol=1e-4, atol=1e-4)):
            print(f"GENERIC MISMATCH for method={method}")
            ok = False

    if ok:
        print("KERNEL_OK")
</pallas_src>

<mosaic_0001>
module attributes {stable_mosaic.version = 11 : i64} {
  func.func @_fused_reduce_kernel(%arg0: i32, %arg1: i32, %arg2: memref<3xf32, #tpu.memory_space<smem>>, %arg3: memref<56x32xf32, #tpu.memory_space<vmem>>, %arg4: memref<32x256xf32, #tpu.memory_space<vmem>>, %arg5: memref<56x256xf32, #tpu.memory_space<vmem>>) attributes {dimension_semantics = [#tpu.dimension_semantics<parallel>, #tpu.dimension_semantics<parallel>], iteration_bounds = array<i64: 2, 1>, scalar_prefetch = 1 : i64, scratch_operands = 0 : i64, tpu.core_type = #tpu.core_type<tc>, window_params = [{transform_indices = @transform_0, window_bounds = array<i64: 56, 32>}, {transform_indices = @transform_1, window_bounds = array<i64: 32, 256>}, {transform_indices = @transform_2, window_bounds = array<i64: 56, 256>}]} {
    %c0 = arith.constant 0 : index
    %c0_0 = arith.constant 0 : index
    %0 = vector.load %arg3[%c0, %c0_0] : memref<56x32xf32, #tpu.memory_space<vmem>>, vector<56x32xf32>
    %c0_1 = arith.constant 0 : index
    %c0_2 = arith.constant 0 : index
    %1 = vector.load %arg4[%c0_1, %c0_2] : memref<32x256xf32, #tpu.memory_space<vmem>>, vector<32x256xf32>
    %cst = arith.constant dense<0.000000e+00> : vector<56x256xf32>
    %2 = tpu.matmul %0, %1, %cst {dimension_numbers = #tpu.dot_dimension_numbers<[1], [0], [0], [1], [0, 0, 1, 1], [], []>} : vector<56x32xf32>, vector<32x256xf32>, vector<56x256xf32> -> vector<56x256xf32>
    %3 = arith.mulf %0, %0 : vector<56x32xf32>
    %cst_3 = arith.constant dense<0.000000e+00> : vector<56xf32>
    %4 = vector.multi_reduction <add>, %3, %cst_3 [1] : vector<56x32xf32> to vector<56xf32>
    %5 = vector.shape_cast %4 : vector<56xf32> to vector<56x1xf32>
    %6 = arith.mulf %1, %1 : vector<32x256xf32>
    %cst_4 = arith.constant dense<0.000000e+00> : vector<256xf32>
    %7 = vector.multi_reduction <add>, %6, %cst_4 [0] : vector<32x256xf32> to vector<256xf32>
    %8 = vector.shape_cast %7 : vector<256xf32> to vector<1x256xf32>
    %cst_5 = arith.constant 2.000000e+00 : f32
    %9 = vector.broadcast %cst_5 : f32 to vector<56x256xf32>
    %10 = arith.mulf %9, %2 : vector<56x256xf32>
    %11 = vector.broadcast %5 : vector<56x1xf32> to vector<56x256xf32>
    %12 = arith.subf %11, %10 : vector<56x256xf32>
    %13 = vector.broadcast %8 : vector<1x256xf32> to vector<56x256xf32>
    %14 = arith.addf %12, %13 : vector<56x256xf32>
    %cst_6 = arith.constant 0.000000e+00 : f32
    %15 = vector.broadcast %cst_6 : f32 to vector<56x256xf32>
    %16 = arith.subf %15, %2 : vector<56x256xf32>
    %17 = vector.extract_strided_slice %0 {offsets = [0, 0], sizes = [56, 1], strides = [1, 1]} : vector<56x32xf32> to vector<56x1xf32>
    %18 = vector.extract_strided_slice %1 {offsets = [0, 0], sizes = [1, 256], strides = [1, 1]} : vector<32x256xf32> to vector<1x256xf32>
    %19 = vector.broadcast %17 : vector<56x1xf32> to vector<56x256xf32>
    %20 = vector.broadcast %18 : vector<1x256xf32> to vector<56x256xf32>
    %21 = arith.subf %19, %20 : vector<56x256xf32>
    %22 = math.absf %21 : vector<56x256xf32>
    %23 = vector.extract_strided_slice %0 {offsets = [0, 1], sizes = [56, 1], strides = [1, 1]} : vector<56x32xf32> to vector<56x1xf32>
    %24 = vector.extract_strided_slice %1 {offsets = [1, 0], sizes = [1, 256], strides = [1, 1]} : vector<32x256xf32> to vector<1x256xf32>
    %25 = vector.broadcast %23 : vector<56x1xf32> to vector<56x256xf32>
    %26 = vector.broadcast %24 : vector<1x256xf32> to vector<56x256xf32>
    %27 = arith.subf %25, %26 : vector<56x256xf32>
    %28 = math.absf %27 : vector<56x256xf32>
    %29 = arith.addf %22, %28 : vector<56x256xf32>
    %30 = vector.extract_strided_slice %0 {offsets = [0, 2], sizes = [56, 1], strides = [1, 1]} : vector<56x32xf32> to vector<56x1xf32>
    %31 = vector.extract_strided_slice %1 {offsets = [2, 0], sizes = [1, 256], strides = [1, 1]} : vector<32x256xf32> to vector<1x256xf32>
    %32 = vector.broadcast %30 : vector<56x1xf32> to vector<56x256xf32>
    %33 = vector.broadcast %31 : vector<1x256xf32> to vector<56x256xf32>
    %34 = arith.subf %32, %33 : vector<56x256xf32>
    %35 = math.absf %34 : vector<56x256xf32>
    %36 = arith.addf %29, %35 : vector<56x256xf32>
    %37 = vector.extract_strided_slice %0 {offsets = [0, 3], sizes = [56, 1], strides = [1, 1]} : vector<56x32xf32> to vector<56x1xf32>
    %38 = vector.extract_strided_slice %1 {offsets = [3, 0], sizes = [1, 256], strides = [1, 1]} : vector<32x256xf32> to vector<1x256xf32>
    %39 = vector.broadcast %37 : vector<56x1xf32> to vector<56x256xf32>
    %40 = vector.broadcast %38 : vector<1x256xf32> to vector<56x256xf32>
    %41 = arith.subf %39, %40 : vector<56x256xf32>
    %42 = math.absf %41 : vector<56x256xf32>
    %43 = arith.addf %36, %42 : vector<56x256xf32>
    %44 = vector.extract_strided_slice %0 {offsets = [0, 4], sizes = [56, 1], strides = [1, 1]} : vector<56x32xf32> to vector<56x1xf32>
    %45 = vector.extract_strided_slice %1 {offsets = [4, 0], sizes = [1, 256], strides = [1, 1]} : vector<32x256xf32> to vector<1x256xf32>
    %46 = vector.broadcast %44 : vector<56x1xf32> to vector<56x256xf32>
    %47 = vector.broadcast %45 : vector<1x256xf32> to vector<56x256xf32>
    %48 = arith.subf %46, %47 : vector<56x256xf32>
    %49 = math.absf %48 : vector<56x256xf32>
    %50 = arith.addf %43, %49 : vector<56x256xf32>
    %51 = vector.extract_strided_slice %0 {offsets = [0, 5], sizes = [56, 1], strides = [1, 1]} : vector<56x32xf32> to vector<56x1xf32>
    %52 = vector.extract_strided_slice %1 {offsets = [5, 0], sizes = [1, 256], strides = [1, 1]} : vector<32x256xf32> to vector<1x256xf32>
    %53 = vector.broadcast %51 : vector<56x1xf32> to vector<56x256xf32>
    %54 = vector.broadcast %52 : vector<1x256xf32> to vector<56x256xf32>
    %55 = arith.subf %53, %54 : vector<56x256xf32>
    %56 = math.absf %55 : vector<56x256xf32>
    %57 = arith.addf %50, %56 : vector<56x256xf32>
    %58 = vector.extract_strided_slice %0 {offsets = [0, 6], sizes = [56, 1], strides = [1, 1]} : vector<56x32xf32> to vector<56x1xf32>
    %59 = vector.extract_strided_slice %1 {offsets = [6, 0], sizes = [1, 256], strides = [1, 1]} : vector<32x256xf32> to vector<1x256xf32>
    %60 = vector.broadcast %58 : vector<56x1xf32> to vector<56x256xf32>
    %61 = vector.broadcast %59 : vector<1x256xf32> to vector<56x256xf32>
    %62 = arith.subf %60, %61 : vector<56x256xf32>
    %63 = math.absf %62 : vector<56x256xf32>
    %64 = arith.addf %57, %63 : vector<56x256xf32>
    %65 = vector.extract_strided_slice %0 {offsets = [0, 7], sizes = [56, 1], strides = [1, 1]} : vector<56x32xf32> to vector<56x1xf32>
    %66 = vector.extract_strided_slice %1 {offsets = [7, 0], sizes = [1, 256], strides = [1, 1]} : vector<32x256xf32> to vector<1x256xf32>
    %67 = vector.broadcast %65 : vector<56x1xf32> to vector<56x256xf32>
    %68 = vector.broadcast %66 : vector<1x256xf32> to vector<56x256xf32>
    %69 = arith.subf %67, %68 : vector<56x256xf32>
    %70 = math.absf %69 : vector<56x256xf32>
    %71 = arith.addf %64, %70 : vector<56x256xf32>
    %72 = vector.extract_strided_slice %0 {offsets = [0, 8], sizes = [56, 1], strides = [1, 1]} : vector<56x32xf32> to vector<56x1xf32>
    %73 = vector.extract_strided_slice %1 {offsets = [8, 0], sizes = [1, 256], strides = [1, 1]} : vector<32x256xf32> to vector<1x256xf32>
    %74 = vector.broadcast %72 : vector<56x1xf32> to vector<56x256xf32>
    %75 = vector.broadcast %73 : vector<1x256xf32> to vector<56x256xf32>
    %76 = arith.subf %74, %75 : vector<56x256xf32>
    %77 = math.absf %76 : vector<56x256xf32>
    %78 = arith.addf %71, %77 : vector<56x256xf32>
    %79 = vector.extract_strided_slice %0 {offsets = [0, 9], sizes = [56, 1], strides = [1, 1]} : vector<56x32xf32> to vector<56x1xf32>
    %80 = vector.extract_strided_slice %1 {offsets = [9, 0], sizes = [1, 256], strides = [1, 1]} : vector<32x256xf32> to vector<1x256xf32>
    %81 = vector.broadcast %79 : vector<56x1xf32> to vector<56x256xf32>
    %82 = vector.broadcast %80 : vector<1x256xf32> to vector<56x256xf32>
    %83 = arith.subf %81, %82 : vector<56x256xf32>
    %84 = math.absf %83 : vector<56x256xf32>
    %85 = arith.addf %78, %84 : vector<56x256xf32>
    %86 = vector.extract_strided_slice %0 {offsets = [0, 10], sizes = [56, 1], strides = [1, 1]} : vector<56x32xf32> to vector<56x1xf32>
    %87 = vector.extract_strided_slice %1 {offsets = [10, 0], sizes = [1, 256], strides = [1, 1]} : vector<32x256xf32> to vector<1x256xf32>
    %88 = vector.broadcast %86 : vector<56x1xf32> to vector<56x256xf32>
    %89 = vector.broadcast %87 : vector<1x256xf32> to vector<56x256xf32>
    %90 = arith.subf %88, %89 : vector<56x256xf32>
    %91 = math.absf %90 : vector<56x256xf32>
    %92 = arith.addf %85, %91 : vector<56x256xf32>
    %93 = vector.extract_strided_slice %0 {offsets = [0, 11], sizes = [56, 1], strides = [1, 1]} : vector<56x32xf32> to vector<56x1xf32>
    %94 = vector.extract_strided_slice %1 {offsets = [11, 0], sizes = [1, 256], strides = [1, 1]} : vector<32x256xf32> to vector<1x256xf32>
    %95 = vector.broadcast %93 : vector<56x1xf32> to vector<56x256xf32>
    %96 = vector.broadcast %94 : vector<1x256xf32> to vector<56x256xf32>
    %97 = arith.subf %95, %96 : vector<56x256xf32>
    %98 = math.absf %97 : vector<56x256xf32>
    %99 = arith.addf %92, %98 : vector<56x256xf32>
    %100 = vector.extract_strided_slice %0 {offsets = [0, 12], sizes = [56, 1], strides = [1, 1]} : vector<56x32xf32> to vector<56x1xf32>
    %101 = vector.extract_strided_slice %1 {offsets = [12, 0], sizes = [1, 256], strides = [1, 1]} : vector<32x256xf32> to vector<1x256xf32>
    %102 = vector.broadcast %100 : vector<56x1xf32> to vector<56x256xf32>
    %103 = vector.broadcast %101 : vector<1x256xf32> to vector<56x256xf32>
    %104 = arith.subf %102, %103 : vector<56x256xf32>
    %105 = math.absf %104 : vector<56x256xf32>
    %106 = arith.addf %99, %105 : vector<56x256xf32>
    %107 = vector.extract_strided_slice %0 {offsets = [0, 13], sizes = [56, 1], strides = [1, 1]} : vector<56x32xf32> to vector<56x1xf32>
    %108 = vector.extract_strided_slice %1 {offsets = [13, 0], sizes = [1, 256], strides = [1, 1]} : vector<32x256xf32> to vector<1x256xf32>
    %109 = vector.broadcast %107 : vector<56x1xf32> to vector<56x256xf32>
    %110 = vector.broadcast %108 : vector<1x256xf32> to vector<56x256xf32>
    %111 = arith.subf %109, %110 : vector<56x256xf32>
    %112 = math.absf %111 : vector<56x256xf32>
    %113 = arith.addf %106, %112 : vector<56x256xf32>
    %114 = vector.extract_strided_slice %0 {offsets = [0, 14], sizes = [56, 1], strides = [1, 1]} : vector<56x32xf32> to vector<56x1xf32>
    %115 = vector.extract_strided_slice %1 {offsets = [14, 0], sizes = [1, 256], strides = [1, 1]} : vector<32x256xf32> to vector<1x256xf32>
    %116 = vector.broadcast %114 : vector<56x1xf32> to vector<56x256xf32>
    %117 = vector.broadcast %115 : vector<1x256xf32> to vector<56x256xf32>
    %118 = arith.subf %116, %117 : vector<56x256xf32>
    %119 = math.absf %118 : vector<56x256xf32>
    %120 = arith.addf %113, %119 : vector<56x256xf32>
    %121 = vector.extract_strided_slice %0 {offsets = [0, 15], sizes = [56, 1], strides = [1, 1]} : vector<56x32xf32> to vector<56x1xf32>
    %122 = vector.extract_strided_slice %1 {offsets = [15, 0], sizes = [1, 256], strides = [1, 1]} : vector<32x256xf32> to vector<1x256xf32>
    %123 = vector.broadcast %121 : vector<56x1xf32> to vector<56x256xf32>
    %124 = vector.broadcast %122 : vector<1x256xf32> to vector<56x256xf32>
    %125 = arith.subf %123, %124 : vector<56x256xf32>
    %126 = math.absf %125 : vector<56x256xf32>
    %127 = arith.addf %120, %126 : vector<56x256xf32>
    %128 = vector.extract_strided_slice %0 {offsets = [0, 16], sizes = [56, 1], strides = [1, 1]} : vector<56x32xf32> to vector<56x1xf32>
    %129 = vector.extract_strided_slice %1 {offsets = [16, 0], sizes = [1, 256], strides = [1, 1]} : vector<32x256xf32> to vector<1x256xf32>
    %130 = vector.broadcast %128 : vector<56x1xf32> to vector<56x256xf32>
    %131 = vector.broadcast %129 : vector<1x256xf32> to vector<56x256xf32>
    %132 = arith.subf %130, %131 : vector<56x256xf32>
    %133 = math.absf %132 : vector<56x256xf32>
    %134 = arith.addf %127, %133 : vector<56x256xf32>
    %135 = vector.extract_strided_slice %0 {offsets = [0, 17], sizes = [56, 1], strides = [1, 1]} : vector<56x32xf32> to vector<56x1xf32>
    %136 = vector.extract_strided_slice %1 {offsets = [17, 0], sizes = [1, 256], strides = [1, 1]} : vector<32x256xf32> to vector<1x256xf32>
    %137 = vector.broadcast %135 : vector<56x1xf32> to vector<56x256xf32>
    %138 = vector.broadcast %136 : vector<1x256xf32> to vector<56x256xf32>
    %139 = arith.subf %137, %138 : vector<56x256xf32>
    %140 = math.absf %139 : vector<56x256xf32>
    %141 = arith.addf %134, %140 : vector<56x256xf32>
    %142 = vector.extract_strided_slice %0 {offsets = [0, 18], sizes = [56, 1], strides = [1, 1]} : vector<56x32xf32> to vector<56x1xf32>
    %143 = vector.extract_strided_slice %1 {offsets = [18, 0], sizes = [1, 256], strides = [1, 1]} : vector<32x256xf32> to vector<1x256xf32>
    %144 = vector.broadcast %142 : vector<56x1xf32> to vector<56x256xf32>
    %145 = vector.broadcast %143 : vector<1x256xf32> to vector<56x256xf32>
    %146 = arith.subf %144, %145 : vector<56x256xf32>
    %147 = math.absf %146 : vector<56x256xf32>
    %148 = arith.addf %141, %147 : vector<56x256xf32>
    %149 = vector.extract_strided_slice %0 {offsets = [0, 19], sizes = [56, 1], strides = [1, 1]} : vector<56x32xf32> to vector<56x1xf32>
    %150 = vector.extract_strided_slice %1 {offsets = [19, 0], sizes = [1, 256], strides = [1, 1]} : vector<32x256xf32> to vector<1x256xf32>
    %151 = vector.broadcast %149 : vector<56x1xf32> to vector<56x256xf32>
    %152 = vector.broadcast %150 : vector<1x256xf32> to vector<56x256xf32>
    %153 = arith.subf %151, %152 : vector<56x256xf32>
    %154 = math.absf %153 : vector<56x256xf32>
    %155 = arith.addf %148, %154 : vector<56x256xf32>
    %156 = vector.extract_strided_slice %0 {offsets = [0, 20], sizes = [56, 1], strides = [1, 1]} : vector<56x32xf32> to vector<56x1xf32>
    %157 = vector.extract_strided_slice %1 {offsets = [20, 0], sizes = [1, 256], strides = [1, 1]} : vector<32x256xf32> to vector<1x256xf32>
    %158 = vector.broadcast %156 : vector<56x1xf32> to vector<56x256xf32>
    %159 = vector.broadcast %157 : vector<1x256xf32> to vector<56x256xf32>
    %160 = arith.subf %158, %159 : vector<56x256xf32>
    %161 = math.absf %160 : vector<56x256xf32>
    %162 = arith.addf %155, %161 : vector<56x256xf32>
    %163 = vector.extract_strided_slice %0 {offsets = [0, 21], sizes = [56, 1], strides = [1, 1]} : vector<56x32xf32> to vector<56x1xf32>
    %164 = vector.extract_strided_slice %1 {offsets = [21, 0], sizes = [1, 256], strides = [1, 1]} : vector<32x256xf32> to vector<1x256xf32>
    %165 = vector.broadcast %163 : vector<56x1xf32> to vector<56x256xf32>
    %166 = vector.broadcast %164 : vector<1x256xf32> to vector<56x256xf32>
    %167 = arith.subf %165, %166 : vector<56x256xf32>
    %168 = math.absf %167 : vector<56x256xf32>
    %169 = arith.addf %162, %168 : vector<56x256xf32>
    %170 = vector.extract_strided_slice %0 {offsets = [0, 22], sizes = [56, 1], strides = [1, 1]} : vector<56x32xf32> to vector<56x1xf32>
    %171 = vector.extract_strided_slice %1 {offsets = [22, 0], sizes = [1, 256], strides = [1, 1]} : vector<32x256xf32> to vector<1x256xf32>
    %172 = vector.broadcast %170 : vector<56x1xf32> to vector<56x256xf32>
    %173 = vector.broadcast %171 : vector<1x256xf32> to vector<56x256xf32>
    %174 = arith.subf %172, %173 : vector<56x256xf32>
    %175 = math.absf %174 : vector<56x256xf32>
    %176 = arith.addf %169, %175 : vector<56x256xf32>
    %177 = vector.extract_strided_slice %0 {offsets = [0, 23], sizes = [56, 1], strides = [1, 1]} : vector<56x32xf32> to vector<56x1xf32>
    %178 = vector.extract_strided_slice %1 {offsets = [23, 0], sizes = [1, 256], strides = [1, 1]} : vector<32x256xf32> to vector<1x256xf32>
    %179 = vector.broadcast %177 : vector<56x1xf32> to vector<56x256xf32>
    %180 = vector.broadcast %178 : vector<1x256xf32> to vector<56x256xf32>
    %181 = arith.subf %179, %180 : vector<56x256xf32>
    %182 = math.absf %181 : vector<56x256xf32>
    %183 = arith.addf %176, %182 : vector<56x256xf32>
    %184 = vector.extract_strided_slice %0 {offsets = [0, 24], sizes = [56, 1], strides = [1, 1]} : vector<56x32xf32> to vector<56x1xf32>
    %185 = vector.extract_strided_slice %1 {offsets = [24, 0], sizes = [1, 256], strides = [1, 1]} : vector<32x256xf32> to vector<1x256xf32>
    %186 = vector.broadcast %184 : vector<56x1xf32> to vector<56x256xf32>
    %187 = vector.broadcast %185 : vector<1x256xf32> to vector<56x256xf32>
    %188 = arith.subf %186, %187 : vector<56x256xf32>
    %189 = math.absf %188 : vector<56x256xf32>
    %190 = arith.addf %183, %189 : vector<56x256xf32>
    %191 = vector.extract_strided_slice %0 {offsets = [0, 25], sizes = [56, 1], strides = [1, 1]} : vector<56x32xf32> to vector<56x1xf32>
    %192 = vector.extract_strided_slice %1 {offsets = [25, 0], sizes = [1, 256], strides = [1, 1]} : vector<32x256xf32> to vector<1x256xf32>
    %193 = vector.broadcast %191 : vector<56x1xf32> to vector<56x256xf32>
    %194 = vector.broadcast %192 : vector<1x256xf32> to vector<56x256xf32>
    %195 = arith.subf %193, %194 : vector<56x256xf32>
    %196 = math.absf %195 : vector<56x256xf32>
    %197 = arith.addf %190, %196 : vector<56x256xf32>
    %198 = vector.extract_strided_slice %0 {offsets = [0, 26], sizes = [56, 1], strides = [1, 1]} : vector<56x32xf32> to vector<56x1xf32>
    %199 = vector.extract_strided_slice %1 {offsets = [26, 0], sizes = [1, 256], strides = [1, 1]} : vector<32x256xf32> to vector<1x256xf32>
    %200 = vector.broadcast %198 : vector<56x1xf32> to vector<56x256xf32>
    %201 = vector.broadcast %199 : vector<1x256xf32> to vector<56x256xf32>
    %202 = arith.subf %200, %201 : vector<56x256xf32>
    %203 = math.absf %202 : vector<56x256xf32>
    %204 = arith.addf %197, %203 : vector<56x256xf32>
    %205 = vector.extract_strided_slice %0 {offsets = [0, 27], sizes = [56, 1], strides = [1, 1]} : vector<56x32xf32> to vector<56x1xf32>
    %206 = vector.extract_strided_slice %1 {offsets = [27, 0], sizes = [1, 256], strides = [1, 1]} : vector<32x256xf32> to vector<1x256xf32>
    %207 = vector.broadcast %205 : vector<56x1xf32> to vector<56x256xf32>
    %208 = vector.broadcast %206 : vector<1x256xf32> to vector<56x256xf32>
    %209 = arith.subf %207, %208 : vector<56x256xf32>
    %210 = math.absf %209 : vector<56x256xf32>
    %211 = arith.addf %204, %210 : vector<56x256xf32>
    %212 = vector.extract_strided_slice %0 {offsets = [0, 28], sizes = [56, 1], strides = [1, 1]} : vector<56x32xf32> to vector<56x1xf32>
    %213 = vector.extract_strided_slice %1 {offsets = [28, 0], sizes = [1, 256], strides = [1, 1]} : vector<32x256xf32> to vector<1x256xf32>
    %214 = vector.broadcast %212 : vector<56x1xf32> to vector<56x256xf32>
    %215 = vector.broadcast %213 : vector<1x256xf32> to vector<56x256xf32>
    %216 = arith.subf %214, %215 : vector<56x256xf32>
    %217 = math.absf %216 : vector<56x256xf32>
    %218 = arith.addf %211, %217 : vector<56x256xf32>
    %219 = vector.extract_strided_slice %0 {offsets = [0, 29], sizes = [56, 1], strides = [1, 1]} : vector<56x32xf32> to vector<56x1xf32>
    %220 = vector.extract_strided_slice %1 {offsets = [29, 0], sizes = [1, 256], strides = [1, 1]} : vector<32x256xf32> to vector<1x256xf32>
    %221 = vector.broadcast %219 : vector<56x1xf32> to vector<56x256xf32>
    %222 = vector.broadcast %220 : vector<1x256xf32> to vector<56x256xf32>
    %223 = arith.subf %221, %222 : vector<56x256xf32>
    %224 = math.absf %223 : vector<56x256xf32>
    %225 = arith.addf %218, %224 : vector<56x256xf32>
    %226 = vector.extract_strided_slice %0 {offsets = [0, 30], sizes = [56, 1], strides = [1, 1]} : vector<56x32xf32> to vector<56x1xf32>
    %227 = vector.extract_strided_slice %1 {offsets = [30, 0], sizes = [1, 256], strides = [1, 1]} : vector<32x256xf32> to vector<1x256xf32>
    %228 = vector.broadcast %226 : vector<56x1xf32> to vector<56x256xf32>
    %229 = vector.broadcast %227 : vector<1x256xf32> to vector<56x256xf32>
    %230 = arith.subf %228, %229 : vector<56x256xf32>
    %231 = math.absf %230 : vector<56x256xf32>
    %232 = arith.addf %225, %231 : vector<56x256xf32>
    %233 = vector.extract_strided_slice %0 {offsets = [0, 31], sizes = [56, 1], strides = [1, 1]} : vector<56x32xf32> to vector<56x1xf32>
    %234 = vector.extract_strided_slice %1 {offsets = [31, 0], sizes = [1, 256], strides = [1, 1]} : vector<32x256xf32> to vector<1x256xf32>
    %235 = vector.broadcast %233 : vector<56x1xf32> to vector<56x256xf32>
    %236 = vector.broadcast %234 : vector<1x256xf32> to vector<56x256xf32>
    %237 = arith.subf %235, %236 : vector<56x256xf32>
    %238 = math.absf %237 : vector<56x256xf32>
    %239 = arith.addf %232, %238 : vector<56x256xf32>
    %c0_7 = arith.constant 0 : index
    %240 = memref.load %arg2[%c0_7] : memref<3xf32, #tpu.memory_space<smem>>
    %241 = vector.broadcast %240 : f32 to vector<56x256xf32>
    %242 = arith.mulf %14, %241 : vector<56x256xf32>
    %c1 = arith.constant 1 : index
    %243 = memref.load %arg2[%c1] : memref<3xf32, #tpu.memory_space<smem>>
    %244 = vector.broadcast %243 : f32 to vector<56x256xf32>
    %245 = arith.mulf %16, %244 : vector<56x256xf32>
    %c2 = arith.constant 2 : index
    %246 = memref.load %arg2[%c2] : memref<3xf32, #tpu.memory_space<smem>>
    %247 = vector.broadcast %246 : f32 to vector<56x256xf32>
    %248 = arith.mulf %239, %247 : vector<56x256xf32>
    %249 = arith.addf %242, %245 : vector<56x256xf32>
    %250 = arith.addf %249, %248 : vector<56x256xf32>
    %c0_8 = arith.constant 0 : index
    %c0_9 = arith.constant 0 : index
    %251 = vector.load %arg5[%c0_8, %c0_9] : memref<56x256xf32, #tpu.memory_space<vmem>>, vector<56x256xf32>
    tpu.vector_store %arg5[%c0_8, %c0_9], %250 {strides = array<i32>} : memref<56x256xf32, #tpu.memory_space<vmem>>, vector<56x256xf32>,
    return
  }
  func.func @transform_0(%arg0: i32, %arg1: i32, %arg2: memref<3xf32, #tpu.memory_space<smem>>) -> (i32, i32) {
    %c0_i32 = arith.constant 0 : i32
    %c0_i32_0 = arith.constant 0 : i32
    return %arg0, %c0_i32 : i32, i32
  }
  func.func @transform_1(%arg0: i32, %arg1: i32, %arg2: memref<3xf32, #tpu.memory_space<smem>>) -> (i32, i32) {
    %c0_i32 = arith.constant 0 : i32
    %c0_i32_0 = arith.constant 0 : i32
    return %c0_i32, %arg1 : i32, i32
  }
  func.func @transform_2(%arg0: i32, %arg1: i32, %arg2: memref<3xf32, #tpu.memory_space<smem>>) -> (i32, i32) {
    %c0_i32 = arith.constant 0 : i32
    return %arg0, %arg1 : i32, i32
  }
}

</mosaic_0001>

<llo_original>
// kernel: tpu_custom_call.1
$region0: #{tpu_custom_call.1}
  #allocation0 [shape = 'u32[]', space=smem, size = 0x4, offset = 0x4, fixed_abs, tag = 'smem constant byte address 0x4 - core index']
  #allocation1 [shape = 'u32[144,128]{1,0:T(1,128)}', space=vmem, size = 0x12000, scoped, tag = 'internal scratch']
  #allocation2 [shape = 's32[1]{0}', space=sflag, size = 0x4, scoped, tag = 'scoped memory for tpu_custom_call.1']
  #allocation3 [shape = 'u8[512]{0}', space=smem, size = 0x200, scoped, tag = 'prefetched SMEM operand 0']
  %s0 = inlined_call_operand.vmem [shape: f32[3], index: 0, kind: input, shape index: {}]
  %s1 = inlined_call_operand.vmem [shape: f32[112,32], index: 1, kind: input, shape index: {}]
  %s2 = inlined_call_operand.vmem [shape: f32[32,256], index: 2, kind: input, shape index: {}]
  %s3 = inlined_call_operand.hbm [shape: f32[112,256], index: 3, kind: output, shape index: {}]
  %s4 = sld [smem:[#allocation0]]
  $region41: #{tpu_custom_call.1} parent=0
    _
  %s6 = ssub.s32 1, %s4
  %s7 = scalar_select 0, %s6, %s4
  %s8 = sshll.u32 %s0, 4
  %s9 = int_to_ptr.vmem [resolvable:$true] %s8
  %11 = dma.vmem_to_smem %s9, 16, [#allocation3], [#allocation2]
  %12 = dma.done [#allocation2], 16
  %13 = sfence
  $region1: #{tpu_custom_call.1} parent=0
    #allocation4 [shape = 'u8[114688]{0}', space=vmem, size = 0x1c000, scoped, tag = 'output window, operand 0']
    #allocation5 [shape = 's32[2]{0}', space=sflag, size = 0x8, scoped, tag = 'scoped memory for tpu_custom_call.1']
    %14 = vsyncpa [#allocation5], 0
    %s15 = scalar_lea.sflag [#allocation5], 1
    %16 = vsyncpa %s15, 0
    loop: start=0, step=1, limit=4
    $region2: #{tpu_custom_call.1} parent=1 // loop_pre_header
      _
    $region3: #{tpu_custom_call.1} parent=1 // loop_header
      %s18 = sphi 0, %s22
      %p19 = scmp.ge.s32.totalorder %s18, 4
      %s25 = sphi 0, %s37
      %s26 = sphi 0, %s33
      %s27 = sphi 0, %s25
      %s28 = sphi 0, %s26
      %s29 = sphi 0, %s27
      %s30 = sphi 0, %s28
      %s40 = sphi 0, %s42
      %s43 = sphi 0, %s40
      %s44 = sphi 0, %s43
      %s60 = sphi 0, %s44
      %s66 = sphi 0, %s68
      %s69 = sphi 0, %s66
      %s70 = sphi 0, %s69
      %s86 = sphi 0, %s70
      %s94 = sphi 0, %s96
      %s97 = sphi 0, %s94
      %s98 = sphi 0, %s97
      %s114 = sphi 0, %s98
    $region4: #{tpu_custom_call.1} parent=1 // loop_header_branch
      %21 = sbr.rel (%p19) target = $region8
    $region5: #{tpu_custom_call.1} parent=1 // loop_body
      %s23 = ssub.s32 %s18, 1
      %s24 = ssub.s32 %s18, 2
      %s31 = sadd.s32 1, %s26
      %p32 = scmp.ge.s32.totalorder %s31, 1
      %s33 = scalar_select %p32, 0, %s31
      %s34 = sadd.s32 1, %s25
      %s35 = scalar_select %p32, %s34, %s25
      %p36 = scmp.ge.s32.totalorder %s35, 2
      %s37 = scalar_select %p36, 0, %s35
      %s38 = ssub.s32 %s25, %s37
      %p39 = scmp.eq.s32.totalorder %s38, 0
      %s41 = sadd.s32 %s40, 1
      %s42 = scalar_select %p39, %s40, %s41
      %p45 = pneg %p39
      %p46 = scmp.eq.s32.totalorder %s18, 1
      %p47 = por %p45, %p46
      %p48 = scmp.ne.s32.totalorder %s40, %s43
      %p49 = scmp.eq.s32.totalorder %s18, 0
      %p50 = por %p48, %p49
      %p51 = scmp.ne.s32.totalorder %s40, %s43
      %p52 = scmp.eq.s32.totalorder %s23, 1
      %p53 = por %p51, %p52
      %p54 = scmp.ne.s32.totalorder %s43, %s44
      %p55 = scmp.eq.s32.totalorder %s23, 0
      %p56 = por %p54, %p55
      %p57 = scmp.ne.s32.totalorder %s43, %s44
      %p58 = scmp.eq.s32.totalorder %s24, 1
      %p59 = por %p57, %p58
      %p61 = scmp.ne.s32.totalorder %s44, %s60
      %p62 = scmp.eq.s32.totalorder %s24, 0
      %p63 = por %p61, %p62
      %s64 = ssub.s32 %s26, %s33
      %p65 = scmp.eq.s32.totalorder %s64, 0
      %s67 = sadd.s32 %s66, 1
      %s68 = scalar_select %p65, %s66, %s67
      %p71 = pneg %p65
      %p72 = scmp.eq.s32.totalorder %s18, 1
      %p73 = por %p71, %p72
      %p74 = scmp.ne.s32.totalorder %s66, %s69
      %p75 = scmp.eq.s32.totalorder %s18, 0
      %p76 = por %p74, %p75
      %p77 = scmp.ne.s32.totalorder %s66, %s69
      %p78 = scmp.eq.s32.totalorder %s23, 1
      %p79 = por %p77, %p78
      %p80 = scmp.ne.s32.totalorder %s69, %s70
      %p81 = scmp.eq.s32.totalorder %s23, 0
      %p82 = por %p80, %p81
      %p83 = scmp.ne.s32.totalorder %s69, %s70
      %p84 = scmp.eq.s32.totalorder %s24, 1
      %p85 = por %p83, %p84
      %p87 = scmp.ne.s32.totalorder %s70, %s86
      %p88 = scmp.eq.s32.totalorder %s24, 0
      %p89 = por %p87, %p88
      %s90 = ssub.s32 %s25, %s37
      %s91 = ssub.s32 %s26, %s33
      %s92 = sor.u32 %s90, %s91
      %p93 = scmp.eq.s32.totalorder %s92, 0
      %s95 = sadd.s32 %s94, 1
      %s96 = scalar_select %p93, %s94, %s95
      %p99 = pneg %p93
      %p100 = scmp.eq.s32.totalorder %s18, 1
      %p101 = por %p99, %p100
      %p102 = scmp.ne.s32.totalorder %s94, %s97
      %p103 = scmp.eq.s32.totalorder %s18, 0
      %p104 = por %p102, %p103
      %p105 = scmp.ne.s32.totalorder %s94, %s97
      %p106 = scmp.eq.s32.totalorder %s23, 1
      %p107 = por %p105, %p106
      %p108 = scmp.ne.s32.totalorder %s97, %s98
      %p109 = scmp.eq.s32.totalorder %s23, 0
      %p110 = por %p108, %p109
      %p111 = scmp.ne.s32.totalorder %s97, %s98
      %p112 = scmp.eq.s32.totalorder %s24, 1
      %p113 = por %p111, %p112
      %p115 = scmp.ne.s32.totalorder %s98, %s114
      %p116 = scmp.eq.s32.totalorder %s24, 0
      %p117 = por %p115, %p116
      %p118 = scmp.le.s32.totalorder 1, %s18
      %p119 = scmp.lt.s32.totalorder %s18, 3
      %p120 = pnand %p118, %p119
      %p121 = pneg %p120
      // Predicated region
      $region9: #{tpu_custom_call.1} parent=5 // pred_check
        _
      $region10: #{tpu_custom_call.1} parent=5 // pred_check_branch
        %123 = sbr.rel (%p120) target = $region12
      $region11: #{tpu_custom_call.1} parent=5 // pred_region
        %s124 = ssub.s32 %s18, 1
        // Predicated region
        $region13: #{tpu_custom_call.1} parent=11 // pred_check
          %p125 = pneg %p82
        $region14: #{tpu_custom_call.1} parent=11 // pred_check_branch
          %127 = sbr.rel (%p125) target = $region16
        $region15: #{tpu_custom_call.1} parent=11 // pred_region
          %s128 = smul.u32 2, %s28
          %p129 = scmp.lt.s32.totalorder %s128, 1
          %s130 = scalar_select %p129, %s128, 1
          %s131 = smul.addr %s130, 8
          %s132 = scalar_lea.vmem %s2, %s131
          %s133 = smul.u32 2, %s28
        $region16: #{tpu_custom_call.1} parent=11 // pred_fallthru
          _
      $region12: #{tpu_custom_call.1} parent=5 // pred_fallthru
        _
      %p134 = scmp.lt.s32.totalorder %s18, 2
      // Predicated region
      $region17: #{tpu_custom_call.1} parent=5 // pred_check
        %p135 = pneg %p134
      $region18: #{tpu_custom_call.1} parent=5 // pred_check_branch
        %137 = sbr.rel (%p135) target = $region20
      $region19: #{tpu_custom_call.1} parent=5 // pred_region
        // Predicated region
        $region21: #{tpu_custom_call.1} parent=19 // pred_check
          %p138 = pneg %p50
        $region22: #{tpu_custom_call.1} parent=19 // pred_check_branch
          %140 = sbr.rel (%p138) target = $region24
        $region23: #{tpu_custom_call.1} parent=19 // pred_region
          %s141 = smul.u32 7, %s25
          %p142 = scmp.lt.s32.totalorder %s141, 13
          %s143 = scalar_select %p142, %s141, 13
          %s144 = smul.addr %s143, 8
          %s145 = scalar_lea.vmem %s1, %s144
          %s146 = smul.u32 7, %s25
        $region24: #{tpu_custom_call.1} parent=19 // pred_fallthru
          _
      $region20: #{tpu_custom_call.1} parent=5 // pred_fallthru
        _
      %p147 = scmp.le.s32.totalorder 1, %s18
      %p148 = scmp.lt.s32.totalorder %s18, 3
      %p149 = pnand %p147, %p148
      %p150 = pneg %p149
      // Predicated region
      $region25: #{tpu_custom_call.1} parent=5 // pred_check
        _
      $region26: #{tpu_custom_call.1} parent=5 // pred_check_branch
        %152 = sbr.rel (%p149) target = $region28
      $region27: #{tpu_custom_call.1} parent=5 // pred_region
        %s153 = ssub.s32 %s18, 1
        %s154 = smul.u32 7, %s27
        %p155 = scmp.lt.s32.totalorder %s154, 13
        %s156 = scalar_select %p155, %s154, 13
        %s157 = smul.addr %s156, 8
        %s158 = scalar_lea.vmem %s1, %s157
        %p159 = pneg %p56
        %p160 = pneg %p53
        %s161 = smul.u32 2, %s28
        %p162 = scmp.lt.s32.totalorder %s161, 1
        %s163 = scalar_select %p162, %s161, 1
        %s164 = smul.addr %s163, 8
        %s165 = scalar_lea.vmem %s2, %s164
        %p166 = pneg %p82
        %p167 = pneg %p79
        %p168 = pneg %p110
        %p169 = pneg %p107
        %s170 = sand.u32 %s97, 1
        %s171 = scalar_lea.sflag [#allocation5], %s170
        %s172 = sand.u32 %s97, 1
        %s173 = smul.addr %s172, 112
        %s174 = scalar_lea.vmem [#allocation4], %s173
        %s175 = smul.u32 7, %s27
        %p176 = scmp.lt.s32.totalorder %s175, 13
        %s177 = scalar_select %p176, %s175, 13
        %s178 = smul.addr %s177, 8
        %s179 = scalar_lea.vmem %s1, %s178
        %s180 = smul.u32 7, %s27
        %s181 = smul.u32 2, %s28
        %p182 = scmp.lt.s32.totalorder %s181, 1
        %s183 = scalar_select %p182, %s181, 1
        %s184 = smul.addr %s183, 8
        %s185 = scalar_lea.vmem %s2, %s184
        %s186 = smul.u32 2, %s28
        %s187 = smul.u32 7, %s27
        %s188 = smul.u32 2, %s28
        %v189 = vld [vmem:[%s179] sm:$0xff]
        %v190 = vld [vmem:[%s179 + $0x8] sm:$0xff]
        %v191 = vld [vmem:[%s179 + $0x10] sm:$0xff]
        %v192 = vld [vmem:[%s179 + $0x18] sm:$0xff]
        %v193 = vld [vmem:[%s179 + $0x20] sm:$0xff]
        %v194 = vld [vmem:[%s179 + $0x28] sm:$0xff]
        %v195 = vld [vmem:[%s179 + $0x30] sm:$0xff]
        %v196 = vld [vmem:[%s185] sm:$0xff]
        %v197 = vld [vmem:[%s185 + $0x8] sm:$0xff]
        %v198 = vld [vmem:[%s185 + $0x10] sm:$0xff]
        %v199 = vld [vmem:[%s185 + $0x18] sm:$0xff]
        %v200 = vld [vmem:[%s185 + $0x20] sm:$0xff]
        %v201 = vld [vmem:[%s185 + $0x28] sm:$0xff]
        %v202 = vld [vmem:[%s185 + $0x30] sm:$0xff]
        %v203 = vld [vmem:[%s185 + $0x38] sm:$0xff]
        %vm204 = vcmask 261120
        %v206 = vsel %vm204, %v189, 0
        %v209 = vsel %vm204, %v190, 0
        %v212 = vsel %vm204, %v191, 0
        %v215 = vsel %vm204, %v192, 0
        %v218 = vsel %vm204, %v193, 0
        %v221 = vsel %vm204, %v194, 0
        %v224 = vsel %vm204, %v195, 0
        %226 = vmatprep.subr.mxu0 0.0
        %227 = vmatpush1.msra.mxu0 0.0
        %228 = vmatprep.subr.mxu0 0.0
        %229 = vmatpush1.msra.mxu0 0.0
        %230 = vmatprep.subr.mxu0 0.0
        %231 = vmatpush1.msra.mxu0 0.0
        %232 = vmatprep.subr.mxu0 0.0
        %233 = vmatpush1.msra.mxu0 0.0
        %234 = vmatprep.subr.mxu0 0.0
        %235 = vmatpush1.msra.mxu0 0.0
        %236 = vmatprep.subr.mxu0 0.0
        %237 = vmatpush1.msra.mxu0 0.0
        %238 = vmatprep.subr.mxu0 0.0
        %239 = vmatpush1.msra.mxu0 0.0
        %240 = vmatprep.subr.mxu0 0.0
        %241 = vmatpush1.msra.mxu0 0.0
        %242 = vmatprep.subr.mxu0 0.0
        %243 = vmatpush1.msra.mxu0 0.0
        %244 = vmatprep.subr.mxu0 0.0
        %245 = vmatpush1.msra.mxu0 0.0
        %246 = vmatprep.subr.mxu0 0.0
        %247 = vmatpush1.msra.mxu0 0.0
        %248 = vmatprep.subr.mxu0 0.0
        %249 = vmatpush1.msra.mxu0 0.0
        %250 = vmatprep.subr.mxu0 %v203
        %251 = vmatpush1.msra.mxu0 %v202
        %252 = vmatprep.subr.mxu0 %v201
        %253 = vmatpush1.msra.mxu0 %v200
        %254 = vmatprep.subr.mxu0 %v199
        %255 = vmatpush1.msra.mxu0 %v198
        %256 = vmatprep.subr.mxu0 %v197
        %257 = vmatpush1.msra.mxu0 %v196
        %258 = vmatprep.subr.mxu0 0.0
        %259 = vmatpush2.msra.mxu0 0.0
        %260 = vmatprep.subr.mxu0 0.0
        %261 = vmatpush2.msra.mxu0 0.0
        %262 = vmatprep.subr.mxu0 0.0
        %263 = vmatpush2.msra.mxu0 0.0
        %264 = vmatprep.subr.mxu0 0.0
        %265 = vmatpush2.msra.mxu0 0.0
        %266 = vmatprep.subr.mxu0 0.0
        %267 = vmatpush2.msra.mxu0 0.0
        %268 = vmatprep.subr.mxu0 0.0
        %269 = vmatpush2.msra.mxu0 0.0
        %270 = vmatprep.subr.mxu0 0.0
        %271 = vmatpush2.msra.mxu0 0.0
        %272 = vmatprep.subr.mxu0 0.0
        %273 = vmatpush2.msra.mxu0 0.0
        %274 = vmatprep.subr.mxu0 0.0
        %275 = vmatpush2.msra.mxu0 0.0
        %276 = vmatprep.subr.mxu0 0.0
        %277 = vmatpush2.msra.mxu0 0.0
        %278 = vmatprep.subr.mxu0 0.0
        %279 = vmatpush2.msra.mxu0 0.0
        %280 = vmatprep.subr.mxu0 0.0
        %281 = vmatpush2.msra.mxu0 0.0
        %282 = vmatprep.subr.mxu0 0.0
        %283 = vmatpush2.msra.mxu0 0.0
        %284 = vmatprep.subr.mxu0 0.0
        %285 = vmatpush2.msra.mxu0 0.0
        %286 = vmatprep.subr.mxu0 0.0
        %287 = vmatpush2.msra.mxu0 0.0
        %288 = vmatprep.subr.mxu0 0.0
        %289 = vmatpush2.msra.mxu0 0.0
        %290 = vmatprep.mubr.f32.mxu0 0.0
        %291 = vmatmul.mubr.f32.gmra.mxu0 %v206
        %v292 = vpop.f32.mrf.mxu0
        %v293 = vadd.f32 0.0, %v292
        %v294 = vpop.f32.mrf.mxu0
        %v295 = vadd.f32 0.0, %v294
        %296 = vmatprep.mubr.f32.mxu0 0.0
        %297 = vmatmul.mubr.f32.gmra.mxu0 %v209
        %v298 = vpop.f32.mrf.mxu0
        %v299 = vadd.f32 0.0, %v298
        %v300 = vpop.f32.mrf.mxu0
        %v301 = vadd.f32 0.0, %v300
        %302 = vmatprep.mubr.f32.mxu0 0.0
        %303 = vmatmul.mubr.f32.gmra.mxu0 %v212
        %v304 = vpop.f32.mrf.mxu0
        %v305 = vadd.f32 0.0, %v304
        %v306 = vpop.f32.mrf.mxu0
        %v307 = vadd.f32 0.0, %v306
        %308 = vmatprep.mubr.f32.mxu0 0.0
        %309 = vmatmul.mubr.f32.gmra.mxu0 %v215
        %v310 = vpop.f32.mrf.mxu0
        %v311 = vadd.f32 0.0, %v310
        %v312 = vpop.f32.mrf.mxu0
        %v313 = vadd.f32 0.0, %v312
        %314 = vmatprep.mubr.f32.mxu0 0.0
        %315 = vmatmul.mubr.f32.gmra.mxu0 %v218
        %v316 = vpop.f32.mrf.mxu0
        %v317 = vadd.f32 0.0, %v316
        %v318 = vpop.f32.mrf.mxu0
        %v319 = vadd.f32 0.0, %v318
        %320 = vmatprep.mubr.f32.mxu0 0.0
        %321 = vmatmul.mubr.f32.gmra.mxu0 %v221
        %v322 = vpop.f32.mrf.mxu0
        %v323 = vadd.f32 0.0, %v322
        %v324 = vpop.f32.mrf.mxu0
        %v325 = vadd.f32 0.0, %v324
        %326 = vmatprep.mubr.f32.mxu0 0.0
        %327 = vmatmul.mubr.f32.gmra.mxu0 %v224
        %v328 = vpop.f32.mrf.mxu0
        %v329 = vadd.f32 0.0, %v328
        %v330 = vpop.f32.mrf.mxu0
        %v331 = vadd.f32 0.0, %v330
        %332 = vdwg.mxu0
        %v333 = vmul.f32 %v189, %v189
        %v334 = vmul.f32 %v190, %v190
        %v335 = vmul.f32 %v191, %v191
        %v336 = vmul.f32 %v192, %v192
        %v337 = vmul.f32 %v193, %v193
        %v338 = vmul.f32 %v194, %v194
        %v339 = vmul.f32 %v195, %v195
        %v340 = vsel %vm204, %v333, 0.0
        %341 = vadd.xlane.f32.xlu0 %v340
        %v342 = vpop.xlane.xlu0 %341
        %v343 = vsel %vm204, %v334, 0.0
        %344 = vadd.xlane.f32.xlu0 %v343
        %v345 = vpop.xlane.xlu0 %344
        %v346 = vsel %vm204, %v335, 0.0
        %347 = vadd.xlane.f32.xlu0 %v346
        %v348 = vpop.xlane.xlu0 %347
        %v349 = vsel %vm204, %v336, 0.0
        %350 = vadd.xlane.f32.xlu0 %v349
        %v351 = vpop.xlane.xlu0 %350
        %v352 = vsel %vm204, %v337, 0.0
        %353 = vadd.xlane.f32.xlu0 %v352
        %v354 = vpop.xlane.xlu0 %353
        %v355 = vsel %vm204, %v338, 0.0
        %356 = vadd.xlane.f32.xlu0 %v355
        %v357 = vpop.xlane.xlu0 %356
        %v358 = vsel %vm204, %v339, 0.0
        %359 = vadd.xlane.f32.xlu0 %v358
        %v360 = vpop.xlane.xlu0 %359
        %v361 = vmul.f32 %v196, %v196
        %v362 = vmul.f32 %v197, %v197
        %v363 = vmul.f32 %v198, %v198
        %v364 = vmul.f32 %v199, %v199
        %v365 = vmul.f32 %v200, %v200
        %v366 = vmul.f32 %v201, %v201
        %v367 = vmul.f32 %v202, %v202
        %v368 = vmul.f32 %v203, %v203
        %v369 = vadd.f32 %v361, %v363
        %v370 = vadd.f32 %v369, %v365
        %v371 = vadd.f32 %v370, %v367
        %v372 = vrot.slane %v371, 4
        %v373 = vadd.f32 %v371, %v372
        %v374 = vrot.slane %v373, 2
        %v375 = vadd.f32 %v373, %v374
        %v376 = vrot.slane %v375, 1
        %v377 = vadd.f32 %v375, %v376
        %v378 = vadd.f32 %v362, %v364
        %v379 = vadd.f32 %v378, %v366
        %v380 = vadd.f32 %v379, %v368
        %v381 = vrot.slane %v380, 4
        %v382 = vadd.f32 %v380, %v381
        %v383 = vrot.slane %v382, 2
        %v384 = vadd.f32 %v382, %v383
        %v385 = vrot.slane %v384, 1
        %v386 = vadd.f32 %v384, %v385
        %v387 = vmul.f32 %v293, 2.0
        %v388 = vmul.f32 %v295, 2.0
        %v389 = vmul.f32 %v299, 2.0
        %v390 = vmul.f32 %v301, 2.0
        %v391 = vmul.f32 %v305, 2.0
        %v392 = vmul.f32 %v307, 2.0
        %v393 = vmul.f32 %v311, 2.0
        %v394 = vmul.f32 %v313, 2.0
        %v395 = vmul.f32 %v317, 2.0
        %v396 = vmul.f32 %v319, 2.0
        %v397 = vmul.f32 %v323, 2.0
        %v398 = vmul.f32 %v325, 2.0
        %v399 = vmul.f32 %v329, 2.0
        %v400 = vmul.f32 %v331, 2.0
        %v401 = vsub.f32 %v342, %v387
        %v402 = vsub.f32 %v342, %v388
        %v403 = vsub.f32 %v345, %v389
        %v404 = vsub.f32 %v345, %v390
        %v405 = vsub.f32 %v348, %v391
        %v406 = vsub.f32 %v348, %v392
        %v407 = vsub.f32 %v351, %v393
        %v408 = vsub.f32 %v351, %v394
        %v409 = vsub.f32 %v354, %v395
        %v410 = vsub.f32 %v354, %v396
        %v411 = vsub.f32 %v357, %v397
        %v412 = vsub.f32 %v357, %v398
        %v413 = vsub.f32 %v360, %v399
        %v414 = vsub.f32 %v360, %v400
        %v415 = vadd.f32 %v401, %v377
        %v416 = vadd.f32 %v402, %v386
        %v417 = vadd.f32 %v403, %v377
        %v418 = vadd.f32 %v404, %v386
        %v419 = vadd.f32 %v405, %v377
        %v420 = vadd.f32 %v406, %v386
        %v421 = vadd.f32 %v407, %v377
        %v422 = vadd.f32 %v408, %v386
        %v423 = vadd.f32 %v409, %v377
        %v424 = vadd.f32 %v410, %v386
        %v425 = vadd.f32 %v411, %v377
        %v426 = vadd.f32 %v412, %v386
        %v427 = vadd.f32 %v413, %v377
        %v428 = vadd.f32 %v414, %v386
        %v429 = vsub.f32 0.0, %v293
        %v430 = vsub.f32 0.0, %v295
        %v431 = vsub.f32 0.0, %v299
        %v432 = vsub.f32 0.0, %v301
        %v433 = vsub.f32 0.0, %v305
        %v434 = vsub.f32 0.0, %v307
        %v435 = vsub.f32 0.0, %v311
        %v436 = vsub.f32 0.0, %v313
        %v437 = vsub.f32 0.0, %v317
        %v438 = vsub.f32 0.0, %v319
        %v439 = vsub.f32 0.0, %v323
        %v440 = vsub.f32 0.0, %v325
        %v441 = vsub.f32 0.0, %v329
        %v442 = vsub.f32 0.0, %v331
        %443 = vset.pattern.permute.xlu0 0
        %444 = vperm.xlu0 %443, %v189
        %v445 = vpop.permute.xlu0 %444
        %447 = vset.pattern.permute.xlu0 0
        %448 = vperm.xlu0 %447, %v190
        %v449 = vpop.permute.xlu0 %448
        %451 = vset.pattern.permute.xlu0 0
        %452 = vperm.xlu0 %451, %v191
        %v453 = vpop.permute.xlu0 %452
        %455 = vset.pattern.permute.xlu0 0
        %456 = vperm.xlu0 %455, %v192
        %v457 = vpop.permute.xlu0 %456
        %459 = vset.pattern.permute.xlu0 0
        %460 = vperm.xlu0 %459, %v193
        %v461 = vpop.permute.xlu0 %460
        %463 = vset.pattern.permute.xlu0 0
        %464 = vperm.xlu0 %463, %v194
        %v465 = vpop.permute.xlu0 %464
        %467 = vset.pattern.permute.xlu0 0
        %468 = vperm.xlu0 %467, %v195
        %v469 = vpop.permute.xlu0 %468
        %v471 = vlaneseq
        %v472 = vshrl.u32 %v471, 7
        %v473 = vsub.s32 0, %v472
        %v474 = vrot.slane %v196, %v473
        %v475 = vlaneseq
        %v476 = vshrl.u32 %v475, 7
        %v477 = vsub.s32 0, %v476
        %v478 = vrot.slane %v197, %v477
        %v479 = vsub.f32 %v445, %v474
        %v480 = vsub.f32 %v445, %v478
        %v481 = vsub.f32 %v449, %v474
        %v482 = vsub.f32 %v449, %v478
        %v483 = vsub.f32 %v453, %v474
        %v484 = vsub.f32 %v453, %v478
        %v485 = vsub.f32 %v457, %v474
        %v486 = vsub.f32 %v457, %v478
        %v487 = vsub.f32 %v461, %v474
        %v488 = vsub.f32 %v461, %v478
        %v489 = vsub.f32 %v465, %v474
        %v490 = vsub.f32 %v465, %v478
        %v491 = vsub.f32 %v469, %v474
        %v492 = vsub.f32 %v469, %v478
        %v493 = vand.u32 2147483647, %v479
        %v494 = vand.u32 2147483647, %v480
        %v495 = vand.u32 2147483647, %v481
        %v496 = vand.u32 2147483647, %v482
        %v497 = vand.u32 2147483647, %v483
        %v498 = vand.u32 2147483647, %v484
        %v499 = vand.u32 2147483647, %v485
        %v500 = vand.u32 2147483647, %v486
        %v501 = vand.u32 2147483647, %v487
        %v502 = vand.u32 2147483647, %v488
        %v503 = vand.u32 2147483647, %v489
        %v504 = vand.u32 2147483647, %v490
        %v505 = vand.u32 2147483647, %v491
        %v506 = vand.u32 2147483647, %v492
        %507 = vset.pattern.permute.xlu0 1
        %508 = vperm.xlu0 %507, %v189
        %v509 = vpop.permute.xlu0 %508
        %511 = vset.pattern.permute.xlu0 1
        %512 = vperm.xlu0 %511, %v190
        %v513 = vpop.permute.xlu0 %512
        %515 = vset.pattern.permute.xlu0 1
        %516 = vperm.xlu0 %515, %v191
        %v517 = vpop.permute.xlu0 %516
        %519 = vset.pattern.permute.xlu0 1
        %520 = vperm.xlu0 %519, %v192
        %v521 = vpop.permute.xlu0 %520
        %523 = vset.pattern.permute.xlu0 1
        %524 = vperm.xlu0 %523, %v193
        %v525 = vpop.permute.xlu0 %524
        %527 = vset.pattern.permute.xlu0 1
        %528 = vperm.xlu0 %527, %v194
        %v529 = vpop.permute.xlu0 %528
        %531 = vset.pattern.permute.xlu0 1
        %532 = vperm.xlu0 %531, %v195
        %v533 = vpop.permute.xlu0 %532
        %v535 = vlaneseq
        %v536 = vshrl.u32 %v535, 7
        %v537 = vsub.s32 1, %v536
        %v538 = vrot.slane %v196, %v537
        %v539 = vlaneseq
        %v540 = vshrl.u32 %v539, 7
        %v541 = vsub.s32 1, %v540
        %v542 = vrot.slane %v197, %v541
        %v543 = vsub.f32 %v509, %v538
        %v544 = vsub.f32 %v509, %v542
        %v545 = vsub.f32 %v513, %v538
        %v546 = vsub.f32 %v513, %v542
        %v547 = vsub.f32 %v517, %v538
        %v548 = vsub.f32 %v517, %v542
        %v549 = vsub.f32 %v521, %v538
        %v550 = vsub.f32 %v521, %v542
        %v551 = vsub.f32 %v525, %v538
        %v552 = vsub.f32 %v525, %v542
        %v553 = vsub.f32 %v529, %v538
        %v554 = vsub.f32 %v529, %v542
        %v555 = vsub.f32 %v533, %v538
        %v556 = vsub.f32 %v533, %v542
        %v557 = vand.u32 2147483647, %v543
        %v558 = vand.u32 2147483647, %v544
        %v559 = vand.u32 2147483647, %v545
        %v560 = vand.u32 2147483647, %v546
        %v561 = vand.u32 2147483647, %v547
        %v562 = vand.u32 2147483647, %v548
        %v563 = vand.u32 2147483647, %v549
        %v564 = vand.u32 2147483647, %v550
        %v565 = vand.u32 2147483647, %v551
        %v566 = vand.u32 2147483647, %v552
        %v567 = vand.u32 2147483647, %v553
        %v568 = vand.u32 2147483647, %v554
        %v569 = vand.u32 2147483647, %v555
        %v570 = vand.u32 2147483647, %v556
        %v571 = vadd.f32 %v493, %v557
        %v572 = vadd.f32 %v494, %v558
        %v573 = vadd.f32 %v495, %v559
        %v574 = vadd.f32 %v496, %v560
        %v575 = vadd.f32 %v497, %v561
        %v576 = vadd.f32 %v498, %v562
        %v577 = vadd.f32 %v499, %v563
        %v578 = vadd.f32 %v500, %v564
        %v579 = vadd.f32 %v501, %v565
        %v580 = vadd.f32 %v502, %v566
        %v581 = vadd.f32 %v503, %v567
        %v582 = vadd.f32 %v504, %v568
        %v583 = vadd.f32 %v505, %v569
        %v584 = vadd.f32 %v506, %v570
        %585 = vset.pattern.permute.xlu0 2
        %586 = vperm.xlu0 %585, %v189
        %v587 = vpop.permute.xlu0 %586
        %589 = vset.pattern.permute.xlu0 2
        %590 = vperm.xlu0 %589, %v190
        %v591 = vpop.permute.xlu0 %590
        %593 = vset.pattern.permute.xlu0 2
        %594 = vperm.xlu0 %593, %v191
        %v595 = vpop.permute.xlu0 %594
        %597 = vset.pattern.permute.xlu0 2
        %598 = vperm.xlu0 %597, %v192
        %v599 = vpop.permute.xlu0 %598
        %601 = vset.pattern.permute.xlu0 2
        %602 = vperm.xlu0 %601, %v193
        %v603 = vpop.permute.xlu0 %602
        %605 = vset.pattern.permute.xlu0 2
        %606 = vperm.xlu0 %605, %v194
        %v607 = vpop.permute.xlu0 %606
        %609 = vset.pattern.permute.xlu0 2
        %610 = vperm.xlu0 %609, %v195
        %v611 = vpop.permute.xlu0 %610
        %v613 = vlaneseq
        %v614 = vshrl.u32 %v613, 7
        %v615 = vsub.s32 2, %v614
        %v616 = vrot.slane %v196, %v615
        %v617 = vlaneseq
        %v618 = vshrl.u32 %v617, 7
        %v619 = vsub.s32 2, %v618
        %v620 = vrot.slane %v197, %v619
        %v621 = vsub.f32 %v587, %v616
        %v622 = vsub.f32 %v587, %v620
        %v623 = vsub.f32 %v591, %v616
        %v624 = vsub.f32 %v591, %v620
        %v625 = vsub.f32 %v595, %v616
        %v626 = vsub.f32 %v595, %v620
        %v627 = vsub.f32 %v599, %v616
        %v628 = vsub.f32 %v599, %v620
        %v629 = vsub.f32 %v603, %v616
        %v630 = vsub.f32 %v603, %v620
        %v631 = vsub.f32 %v607, %v616
        %v632 = vsub.f32 %v607, %v620
        %v633 = vsub.f32 %v611, %v616
        %v634 = vsub.f32 %v611, %v620
        %v635 = vand.u32 2147483647, %v621
        %v636 = vand.u32 2147483647, %v622
        %v637 = vand.u32 2147483647, %v623
        %v638 = vand.u32 2147483647, %v624
        %v639 = vand.u32 2147483647, %v625
        %v640 = vand.u32 2147483647, %v626
        %v641 = vand.u32 2147483647, %v627
        %v642 = vand.u32 2147483647, %v628
        %v643 = vand.u32 2147483647, %v629
        %v644 = vand.u32 2147483647, %v630
        %v645 = vand.u32 2147483647, %v631
        %v646 = vand.u32 2147483647, %v632
        %v647 = vand.u32 2147483647, %v633
        %v648 = vand.u32 2147483647, %v634
        %v649 = vadd.f32 %v571, %v635
        %v650 = vadd.f32 %v572, %v636
        %v651 = vadd.f32 %v573, %v637
        %v652 = vadd.f32 %v574, %v638
        %v653 = vadd.f32 %v575, %v639
        %v654 = vadd.f32 %v576, %v640
        %v655 = vadd.f32 %v577, %v641
        %v656 = vadd.f32 %v578, %v642
        %v657 = vadd.f32 %v579, %v643
        %v658 = vadd.f32 %v580, %v644
        %v659 = vadd.f32 %v581, %v645
        %v660 = vadd.f32 %v582, %v646
        %v661 = vadd.f32 %v583, %v647
        %v662 = vadd.f32 %v584, %v648
        %663 = vset.pattern.permute.xlu0 3
        %664 = vperm.xlu0 %663, %v189
        %v665 = vpop.permute.xlu0 %664
        %667 = vset.pattern.permute.xlu0 3
        %668 = vperm.xlu0 %667, %v190
        %v669 = vpop.permute.xlu0 %668
        %671 = vset.pattern.permute.xlu0 3
        %672 = vperm.xlu0 %671, %v191
        %v673 = vpop.permute.xlu0 %672
        %675 = vset.pattern.permute.xlu0 3
        %676 = vperm.xlu0 %675, %v192
        %v677 = vpop.permute.xlu0 %676
        %679 = vset.pattern.permute.xlu0 3
        %680 = vperm.xlu0 %679, %v193
        %v681 = vpop.permute.xlu0 %680
        %683 = vset.pattern.permute.xlu0 3
        %684 = vperm.xlu0 %683, %v194
        %v685 = vpop.permute.xlu0 %684
        %687 = vset.pattern.permute.xlu0 3
        %688 = vperm.xlu0 %687, %v195
        %v689 = vpop.permute.xlu0 %688
        %v691 = vlaneseq
        %v692 = vshrl.u32 %v691, 7
        %v693 = vsub.s32 3, %v692
        %v694 = vrot.slane %v196, %v693
        %v695 = vlaneseq
        %v696 = vshrl.u32 %v695, 7
        %v697 = vsub.s32 3, %v696
        %v698 = vrot.slane %v197, %v697
        %v699 = vsub.f32 %v665, %v694
        %v700 = vsub.f32 %v665, %v698
        %v701 = vsub.f32 %v669, %v694
        %v702 = vsub.f32 %v669, %v698
        %v703 = vsub.f32 %v673, %v694
        %v704 = vsub.f32 %v673, %v698
        %v705 = vsub.f32 %v677, %v694
        %v706 = vsub.f32 %v677, %v698
        %v707 = vsub.f32 %v681, %v694
        %v708 = vsub.f32 %v681, %v698
        %v709 = vsub.f32 %v685, %v694
        %v710 = vsub.f32 %v685, %v698
        %v711 = vsub.f32 %v689, %v694
        %v712 = vsub.f32 %v689, %v698
        %v713 = vand.u32 2147483647, %v699
        %v714 = vand.u32 2147483647, %v700
        %v715 = vand.u32 2147483647, %v701
        %v716 = vand.u32 2147483647, %v702
        %v717 = vand.u32 2147483647, %v703
        %v718 = vand.u32 2147483647, %v704
        %v719 = vand.u32 2147483647, %v705
        %v720 = vand.u32 2147483647, %v706
        %v721 = vand.u32 2147483647, %v707
        %v722 = vand.u32 2147483647, %v708
        %v723 = vand.u32 2147483647, %v709
        %v724 = vand.u32 2147483647, %v710
        %v725 = vand.u32 2147483647, %v711
        %v726 = vand.u32 2147483647, %v712
        %v727 = vadd.f32 %v649, %v713
        %v728 = vadd.f32 %v650, %v714
        %v729 = vadd.f32 %v651, %v715
        %v730 = vadd.f32 %v652, %v716
        %v731 = vadd.f32 %v653, %v717
        %v732 = vadd.f32 %v654, %v718
        %v733 = vadd.f32 %v655, %v719
        %v734 = vadd.f32 %v656, %v720
        %v735 = vadd.f32 %v657, %v721
        %v736 = vadd.f32 %v658, %v722
        %v737 = vadd.f32 %v659, %v723
        %v738 = vadd.f32 %v660, %v724
        %v739 = vadd.f32 %v661, %v725
        %v740 = vadd.f32 %v662, %v726
        %741 = vset.pattern.permute.xlu0 4
        %742 = vperm.xlu0 %741, %v189
        %v743 = vpop.permute.xlu0 %742
        %745 = vset.pattern.permute.xlu0 4
        %746 = vperm.xlu0 %745, %v190
        %v747 = vpop.permute.xlu0 %746
        %749 = vset.pattern.permute.xlu0 4
        %750 = vperm.xlu0 %749, %v191
        %v751 = vpop.permute.xlu0 %750
        %753 = vset.pattern.permute.xlu0 4
        %754 = vperm.xlu0 %753, %v192
        %v755 = vpop.permute.xlu0 %754
        %757 = vset.pattern.permute.xlu0 4
        %758 = vperm.xlu0 %757, %v193
        %v759 = vpop.permute.xlu0 %758
        %761 = vset.pattern.permute.xlu0 4
        %762 = vperm.xlu0 %761, %v194
        %v763 = vpop.permute.xlu0 %762
        %765 = vset.pattern.permute.xlu0 4
        %766 = vperm.xlu0 %765, %v195
        %v767 = vpop.permute.xlu0 %766
        %v769 = vlaneseq
        %v770 = vshrl.u32 %v769, 7
        %v771 = vsub.s32 4, %v770
        %v772 = vrot.slane %v196, %v771
        %v773 = vlaneseq
        %v774 = vshrl.u32 %v773, 7
        %v775 = vsub.s32 4, %v774
        %v776 = vrot.slane %v197, %v775
        %v777 = vsub.f32 %v743, %v772
        %v778 = vsub.f32 %v743, %v776
        %v779 = vsub.f32 %v747, %v772
        %v780 = vsub.f32 %v747, %v776
        %v781 = vsub.f32 %v751, %v772
        %v782 = vsub.f32 %v751, %v776
        %v783 = vsub.f32 %v755, %v772
        %v784 = vsub.f32 %v755, %v776
        %v785 = vsub.f32 %v759, %v772
        %v786 = vsub.f32 %v759, %v776
        %v787 = vsub.f32 %v763, %v772
        %v788 = vsub.f32 %v763, %v776
        %v789 = vsub.f32 %v767, %v772
        %v790 = vsub.f32 %v767, %v776
        %v791 = vand.u32 2147483647, %v777
        %v792 = vand.u32 2147483647, %v778
        %v793 = vand.u32 2147483647, %v779
        %v794 = vand.u32 2147483647, %v780
        %v795 = vand.u32 2147483647, %v781
        %v796 = vand.u32 2147483647, %v782
        %v797 = vand.u32 2147483647, %v783
        %v798 = vand.u32 2147483647, %v784
        %v799 = vand.u32 2147483647, %v785
        %v800 = vand.u32 2147483647, %v786
        %v801 = vand.u32 2147483647, %v787
        %v802 = vand.u32 2147483647, %v788
        %v803 = vand.u32 2147483647, %v789
        %v804 = vand.u32 2147483647, %v790
        %v805 = vadd.f32 %v727, %v791
        %v806 = vadd.f32 %v728, %v792
        %v807 = vadd.f32 %v729, %v793
        %v808 = vadd.f32 %v730, %v794
        %v809 = vadd.f32 %v731, %v795
        %v810 = vadd.f32 %v732, %v796
        %v811 = vadd.f32 %v733, %v797
        %v812 = vadd.f32 %v734, %v798
        %v813 = vadd.f32 %v735, %v799
        %v814 = vadd.f32 %v736, %v800
        %v815 = vadd.f32 %v737, %v801
        %v816 = vadd.f32 %v738, %v802
        %v817 = vadd.f32 %v739, %v803
        %v818 = vadd.f32 %v740, %v804
        %819 = vset.pattern.permute.xlu0 5
        %820 = vperm.xlu0 %819, %v189
        %v821 = vpop.permute.xlu0 %820
        %823 = vset.pattern.permute.xlu0 5
        %824 = vperm.xlu0 %823, %v190
        %v825 = vpop.permute.xlu0 %824
        %827 = vset.pattern.permute.xlu0 5
        %828 = vperm.xlu0 %827, %v191
        %v829 = vpop.permute.xlu0 %828
        %831 = vset.pattern.permute.xlu0 5
        %832 = vperm.xlu0 %831, %v192
        %v833 = vpop.permute.xlu0 %832
        %835 = vset.pattern.permute.xlu0 5
        %836 = vperm.xlu0 %835, %v193
        %v837 = vpop.permute.xlu0 %836
        %839 = vset.pattern.permute.xlu0 5
        %840 = vperm.xlu0 %839, %v194
        %v841 = vpop.permute.xlu0 %840
        %843 = vset.pattern.permute.xlu0 5
        %844 = vperm.xlu0 %843, %v195
        %v845 = vpop.permute.xlu0 %844
        %v847 = vlaneseq
        %v848 = vshrl.u32 %v847, 7
        %v849 = vsub.s32 5, %v848
        %v850 = vrot.slane %v196, %v849
        %v851 = vlaneseq
        %v852 = vshrl.u32 %v851, 7
        %v853 = vsub.s32 5, %v852
        %v854 = vrot.slane %v197, %v853
        %v855 = vsub.f32 %v821, %v850
        %v856 = vsub.f32 %v821, %v854
        %v857 = vsub.f32 %v825, %v850
        %v858 = vsub.f32 %v825, %v854
        %v859 = vsub.f32 %v829, %v850
        %v860 = vsub.f32 %v829, %v854
        %v861 = vsub.f32 %v833, %v850
        %v862 = vsub.f32 %v833, %v854
        %v863 = vsub.f32 %v837, %v850
        %v864 = vsub.f32 %v837, %v854
        %v865 = vsub.f32 %v841, %v850
        %v866 = vsub.f32 %v841, %v854
        %v867 = vsub.f32 %v845, %v850
        %v868 = vsub.f32 %v845, %v854
        %v869 = vand.u32 2147483647, %v855
        %v870 = vand.u32 2147483647, %v856
        %v871 = vand.u32 2147483647, %v857
        %v872 = vand.u32 2147483647, %v858
        %v873 = vand.u32 2147483647, %v859
        %v874 = vand.u32 2147483647, %v860
        %v875 = vand.u32 2147483647, %v861
        %v876 = vand.u32 2147483647, %v862
        %v877 = vand.u32 2147483647, %v863
        %v878 = vand.u32 2147483647, %v864
        %v879 = vand.u32 2147483647, %v865
        %v880 = vand.u32 2147483647, %v866
        %v881 = vand.u32 2147483647, %v867
        %v882 = vand.u32 2147483647, %v868
        %v883 = vadd.f32 %v805, %v869
        %v884 = vadd.f32 %v806, %v870
        %v885 = vadd.f32 %v807, %v871
        %v886 = vadd.f32 %v808, %v872
        %v887 = vadd.f32 %v809, %v873
        %v888 = vadd.f32 %v810, %v874
        %v889 = vadd.f32 %v811, %v875
        %v890 = vadd.f32 %v812, %v876
        %v891 = vadd.f32 %v813, %v877
        %v892 = vadd.f32 %v814, %v878
        %v893 = vadd.f32 %v815, %v879
        %v894 = vadd.f32 %v816, %v880
        %v895 = vadd.f32 %v817, %v881
        %v896 = vadd.f32 %v818, %v882
        %897 = vset.pattern.permute.xlu0 6
        %898 = vperm.xlu0 %897, %v189
        %v899 = vpop.permute.xlu0 %898
        %901 = vset.pattern.permute.xlu0 6
        %902 = vperm.xlu0 %901, %v190
        %v903 = vpop.permute.xlu0 %902
        %905 = vset.pattern.permute.xlu0 6
        %906 = vperm.xlu0 %905, %v191
        %v907 = vpop.permute.xlu0 %906
        %909 = vset.pattern.permute.xlu0 6
        %910 = vperm.xlu0 %909, %v192
        %v911 = vpop.permute.xlu0 %910
        %913 = vset.pattern.permute.xlu0 6
        %914 = vperm.xlu0 %913, %v193
        %v915 = vpop.permute.xlu0 %914
        %917 = vset.pattern.permute.xlu0 6
        %918 = vperm.xlu0 %917, %v194
        %v919 = vpop.permute.xlu0 %918
        %921 = vset.pattern.permute.xlu0 6
        %922 = vperm.xlu0 %921, %v195
        %v923 = vpop.permute.xlu0 %922
        %v925 = vlaneseq
        %v926 = vshrl.u32 %v925, 7
        %v927 = vsub.s32 6, %v926
        %v928 = vrot.slane %v196, %v927
        %v929 = vlaneseq
        %v930 = vshrl.u32 %v929, 7
        %v931 = vsub.s32 6, %v930
        %v932 = vrot.slane %v197, %v931
        %v933 = vsub.f32 %v899, %v928
        %v934 = vsub.f32 %v899, %v932
        %v935 = vsub.f32 %v903, %v928
        %v936 = vsub.f32 %v903, %v932
        %v937 = vsub.f32 %v907, %v928
        %v938 = vsub.f32 %v907, %v932
        %v939 = vsub.f32 %v911, %v928
        %v940 = vsub.f32 %v911, %v932
        %v941 = vsub.f32 %v915, %v928
        %v942 = vsub.f32 %v915, %v932
        %v943 = vsub.f32 %v919, %v928
        %v944 = vsub.f32 %v919, %v932
        %v945 = vsub.f32 %v923, %v928
        %v946 = vsub.f32 %v923, %v932
        %v947 = vand.u32 2147483647, %v933
        %v948 = vand.u32 2147483647, %v934
        %v949 = vand.u32 2147483647, %v935
        %v950 = vand.u32 2147483647, %v936
        %v951 = vand.u32 2147483647, %v937
        %v952 = vand.u32 2147483647, %v938
        %v953 = vand.u32 2147483647, %v939
        %v954 = vand.u32 2147483647, %v940
        %v955 = vand.u32 2147483647, %v941
        %v956 = vand.u32 2147483647, %v942
        %v957 = vand.u32 2147483647, %v943
        %v958 = vand.u32 2147483647, %v944
        %v959 = vand.u32 2147483647, %v945
        %v960 = vand.u32 2147483647, %v946
        %v961 = vadd.f32 %v883, %v947
        %v962 = vadd.f32 %v884, %v948
        %v963 = vadd.f32 %v885, %v949
        %v964 = vadd.f32 %v886, %v950
        %v965 = vadd.f32 %v887, %v951
        %v966 = vadd.f32 %v888, %v952
        %v967 = vadd.f32 %v889, %v953
        %v968 = vadd.f32 %v890, %v954
        %v969 = vadd.f32 %v891, %v955
        %v970 = vadd.f32 %v892, %v956
        %v971 = vadd.f32 %v893, %v957
        %v972 = vadd.f32 %v894, %v958
        %v973 = vadd.f32 %v895, %v959
        %v974 = vadd.f32 %v896, %v960
        %975 = vset.pattern.permute.xlu0 7
        %976 = vperm.xlu0 %975, %v189
        %v977 = vpop.permute.xlu0 %976
        %979 = vset.pattern.permute.xlu0 7
        %980 = vperm.xlu0 %979, %v190
        %v981 = vpop.permute.xlu0 %980
        %983 = vset.pattern.permute.xlu0 7
        %984 = vperm.xlu0 %983, %v191
        %v985 = vpop.permute.xlu0 %984
        %987 = vset.pattern.permute.xlu0 7
        %988 = vperm.xlu0 %987, %v192
        %v989 = vpop.permute.xlu0 %988
        %991 = vset.pattern.permute.xlu0 7
        %992 = vperm.xlu0 %991, %v193
        %v993 = vpop.permute.xlu0 %992
        %995 = vset.pattern.permute.xlu0 7
        %996 = vperm.xlu0 %995, %v194
        %v997 = vpop.permute.xlu0 %996
        %999 = vset.pattern.permute.xlu0 7
        %1000 = vperm.xlu0 %999, %v195
        %v1001 = vpop.permute.xlu0 %1000
        %v1003 = vlaneseq
        %v1004 = vshrl.u32 %v1003, 7
        %v1005 = vsub.s32 7, %v1004
        %v1006 = vrot.slane %v196, %v1005
        %v1007 = vlaneseq
        %v1008 = vshrl.u32 %v1007, 7
        %v1009 = vsub.s32 7, %v1008
        %v1010 = vrot.slane %v197, %v1009
        %v1011 = vsub.f32 %v977, %v1006
        %v1012 = vsub.f32 %v977, %v1010
        %v1013 = vsub.f32 %v981, %v1006
        %v1014 = vsub.f32 %v981, %v1010
        %v1015 = vsub.f32 %v985, %v1006
        %v1016 = vsub.f32 %v985, %v1010
        %v1017 = vsub.f32 %v989, %v1006
        %v1018 = vsub.f32 %v989, %v1010
        %v1019 = vsub.f32 %v993, %v1006
        %v1020 = vsub.f32 %v993, %v1010
        %v1021 = vsub.f32 %v997, %v1006
        %v1022 = vsub.f32 %v997, %v1010
        %v1023 = vsub.f32 %v1001, %v1006
        %v1024 = vsub.f32 %v1001, %v1010
        %v1025 = vand.u32 2147483647, %v1011
        %v1026 = vand.u32 2147483647, %v1012
        %v1027 = vand.u32 2147483647, %v1013
        %v1028 = vand.u32 2147483647, %v1014
        %v1029 = vand.u32 2147483647, %v1015
        %v1030 = vand.u32 2147483647, %v1016
        %v1031 = vand.u32 2147483647, %v1017
        %v1032 = vand.u32 2147483647, %v1018
        %v1033 = vand.u32 2147483647, %v1019
        %v1034 = vand.u32 2147483647, %v1020
        %v1035 = vand.u32 2147483647, %v1021
        %v1036 = vand.u32 2147483647, %v1022
        %v1037 = vand.u32 2147483647, %v1023
        %v1038 = vand.u32 2147483647, %v1024
        %v1039 = vadd.f32 %v961, %v1025
        %v1040 = vadd.f32 %v962, %v1026
        %v1041 = vadd.f32 %v963, %v1027
        %v1042 = vadd.f32 %v964, %v1028
        %v1043 = vadd.f32 %v965, %v1029
        %v1044 = vadd.f32 %v966, %v1030
        %v1045 = vadd.f32 %v967, %v1031
        %v1046 = vadd.f32 %v968, %v1032
        %v1047 = vadd.f32 %v969, %v1033
        %v1048 = vadd.f32 %v970, %v1034
        %v1049 = vadd.f32 %v971, %v1035
        %v1050 = vadd.f32 %v972, %v1036
        %v1051 = vadd.f32 %v973, %v1037
        %v1052 = vadd.f32 %v974, %v1038
        %1053 = vset.pattern.permute.xlu0 8
        %1054 = vperm.xlu0 %1053, %v189
        %v1055 = vpop.permute.xlu0 %1054
        %1057 = vset.pattern.permute.xlu0 8
        %1058 = vperm.xlu0 %1057, %v190
        %v1059 = vpop.permute.xlu0 %1058
        %1061 = vset.pattern.permute.xlu0 8
        %1062 = vperm.xlu0 %1061, %v191
        %v1063 = vpop.permute.xlu0 %1062
        %1065 = vset.pattern.permute.xlu0 8
        %1066 = vperm.xlu0 %1065, %v192
        %v1067 = vpop.permute.xlu0 %1066
        %1069 = vset.pattern.permute.xlu0 8
        %1070 = vperm.xlu0 %1069, %v193
        %v1071 = vpop.permute.xlu0 %1070
        %1073 = vset.pattern.permute.xlu0 8
        %1074 = vperm.xlu0 %1073, %v194
        %v1075 = vpop.permute.xlu0 %1074
        %1077 = vset.pattern.permute.xlu0 8
        %1078 = vperm.xlu0 %1077, %v195
        %v1079 = vpop.permute.xlu0 %1078
        %v1081 = vlaneseq
        %v1082 = vshrl.u32 %v1081, 7
        %v1083 = vsub.s32 0, %v1082
        %v1084 = vrot.slane %v198, %v1083
        %v1085 = vlaneseq
        %v1086 = vshrl.u32 %v1085, 7
        %v1087 = vsub.s32 0, %v1086
        %v1088 = vrot.slane %v199, %v1087
        %v1089 = vsub.f32 %v1055, %v1084
        %v1090 = vsub.f32 %v1055, %v1088
        %v1091 = vsub.f32 %v1059, %v1084
        %v1092 = vsub.f32 %v1059, %v1088
        %v1093 = vsub.f32 %v1063, %v1084
        %v1094 = vsub.f32 %v1063, %v1088
        %v1095 = vsub.f32 %v1067, %v1084
        %v1096 = vsub.f32 %v1067, %v1088
        %v1097 = vsub.f32 %v1071, %v1084
        %v1098 = vsub.f32 %v1071, %v1088
        %v1099 = vsub.f32 %v1075, %v1084
        %v1100 = vsub.f32 %v1075, %v1088
        %v1101 = vsub.f32 %v1079, %v1084
        %v1102 = vsub.f32 %v1079, %v1088
        %v1103 = vand.u32 2147483647, %v1089
        %v1104 = vand.u32 2147483647, %v1090
        %v1105 = vand.u32 2147483647, %v1091
        %v1106 = vand.u32 2147483647, %v1092
        %v1107 = vand.u32 2147483647, %v1093
        %v1108 = vand.u32 2147483647, %v1094
        %v1109 = vand.u32 2147483647, %v1095
        %v1110 = vand.u32 2147483647, %v1096
        %v1111 = vand.u32 2147483647, %v1097
        %v1112 = vand.u32 2147483647, %v1098
        %v1113 = vand.u32 2147483647, %v1099
        %v1114 = vand.u32 2147483647, %v1100
        %v1115 = vand.u32 2147483647, %v1101
        %v1116 = vand.u32 2147483647, %v1102
        %v1117 = vadd.f32 %v1039, %v1103
        %v1118 = vadd.f32 %v1040, %v1104
        %v1119 = vadd.f32 %v1041, %v1105
        %v1120 = vadd.f32 %v1042, %v1106
        %v1121 = vadd.f32 %v1043, %v1107
        %v1122 = vadd.f32 %v1044, %v1108
        %v1123 = vadd.f32 %v1045, %v1109
        %v1124 = vadd.f32 %v1046, %v1110
        %v1125 = vadd.f32 %v1047, %v1111
        %v1126 = vadd.f32 %v1048, %v1112
        %v1127 = vadd.f32 %v1049, %v1113
        %v1128 = vadd.f32 %v1050, %v1114
        %v1129 = vadd.f32 %v1051, %v1115
        %v1130 = vadd.f32 %v1052, %v1116
        %1131 = vset.pattern.permute.xlu0 9
        %1132 = vperm.xlu0 %1131, %v189
        %v1133 = vpop.permute.xlu0 %1132
        %1135 = vset.pattern.permute.xlu0 9
        %1136 = vperm.xlu0 %1135, %v190
        %v1137 = vpop.permute.xlu0 %1136
        %1139 = vset.pattern.permute.xlu0 9
        %1140 = vperm.xlu0 %1139, %v191
        %v1141 = vpop.permute.xlu0 %1140
        %1143 = vset.pattern.permute.xlu0 9
        %1144 = vperm.xlu0 %1143, %v192
        %v1145 = vpop.permute.xlu0 %1144
        %1147 = vset.pattern.permute.xlu0 9
        %1148 = vperm.xlu0 %1147, %v193
        %v1149 = vpop.permute.xlu0 %1148
        %1151 = vset.pattern.permute.xlu0 9
        %1152 = vperm.xlu0 %1151, %v194
        %v1153 = vpop.permute.xlu0 %1152
        %1155 = vset.pattern.permute.xlu0 9
        %1156 = vperm.xlu0 %1155, %v195
        %v1157 = vpop.permute.xlu0 %1156
        %v1159 = vlaneseq
        %v1160 = vshrl.u32 %v1159, 7
        %v1161 = vsub.s32 1, %v1160
        %v1162 = vrot.slane %v198, %v1161
        %v1163 = vlaneseq
        %v1164 = vshrl.u32 %v1163, 7
        %v1165 = vsub.s32 1, %v1164
        %v1166 = vrot.slane %v199, %v1165
        %v1167 = vsub.f32 %v1133, %v1162
        %v1168 = vsub.f32 %v1133, %v1166
        %v1169 = vsub.f32 %v1137, %v1162
        %v1170 = vsub.f32 %v1137, %v1166
        %v1171 = vsub.f32 %v1141, %v1162
        %v1172 = vsub.f32 %v1141, %v1166
        %v1173 = vsub.f32 %v1145, %v1162
        %v1174 = vsub.f32 %v1145, %v1166
        %v1175 = vsub.f32 %v1149, %v1162
        %v1176 = vsub.f32 %v1149, %v1166
        %v1177 = vsub.f32 %v1153, %v1162
        %v1178 = vsub.f32 %v1153, %v1166
        %v1179 = vsub.f32 %v1157, %v1162
        %v1180 = vsub.f32 %v1157, %v1166
        %v1181 = vand.u32 2147483647, %v1167
        %v1182 = vand.u32 2147483647, %v1168
        %v1183 = vand.u32 2147483647, %v1169
        %v1184 = vand.u32 2147483647, %v1170
        %v1185 = vand.u32 2147483647, %v1171
        %v1186 = vand.u32 2147483647, %v1172
        %v1187 = vand.u32 2147483647, %v1173
        %v1188 = vand.u32 2147483647, %v1174
        %v1189 = vand.u32 2147483647, %v1175
        %v1190 = vand.u32 2147483647, %v1176
        %v1191 = vand.u32 2147483647, %v1177
        %v1192 = vand.u32 2147483647, %v1178
        %v1193 = vand.u32 2147483647, %v1179
        %v1194 = vand.u32 2147483647, %v1180
        %v1195 = vadd.f32 %v1117, %v1181
        %v1196 = vadd.f32 %v1118, %v1182
        %v1197 = vadd.f32 %v1119, %v1183
        %v1198 = vadd.f32 %v1120, %v1184
        %v1199 = vadd.f32 %v1121, %v1185
        %v1200 = vadd.f32 %v1122, %v1186
        %v1201 = vadd.f32 %v1123, %v1187
        %v1202 = vadd.f32 %v1124, %v1188
        %v1203 = vadd.f32 %v1125, %v1189
        %v1204 = vadd.f32 %v1126, %v1190
        %v1205 = vadd.f32 %v1127, %v1191
        %v1206 = vadd.f32 %v1128, %v1192
        %v1207 = vadd.f32 %v1129, %v1193
        %v1208 = vadd.f32 %v1130, %v1194
        %1209 = vset.pattern.permute.xlu0 10
        %1210 = vperm.xlu0 %1209, %v189
        %v1211 = vpop.permute.xlu0 %1210
        %1213 = vset.pattern.permute.xlu0 10
        %1214 = vperm.xlu0 %1213, %v190
        %v1215 = vpop.permute.xlu0 %1214
        %1217 = vset.pattern.permute.xlu0 10
        %1218 = vperm.xlu0 %1217, %v191
        %v1219 = vpop.permute.xlu0 %1218
        %1221 = vset.pattern.permute.xlu0 10
        %1222 = vperm.xlu0 %1221, %v192
        %v1223 = vpop.permute.xlu0 %1222
        %1225 = vset.pattern.permute.xlu0 10
        %1226 = vperm.xlu0 %1225, %v193
        %v1227 = vpop.permute.xlu0 %1226
        %1229 = vset.pattern.permute.xlu0 10
        %1230 = vperm.xlu0 %1229, %v194
        %v1231 = vpop.permute.xlu0 %1230
        %1233 = vset.pattern.permute.xlu0 10
        %1234 = vperm.xlu0 %1233, %v195
        %v1235 = vpop.permute.xlu0 %1234
        %v1237 = vlaneseq
        %v1238 = vshrl.u32 %v1237, 7
        %v1239 = vsub.s32 2, %v1238
        %v1240 = vrot.slane %v198, %v1239
        %v1241 = vlaneseq
        %v1242 = vshrl.u32 %v1241, 7
        %v1243 = vsub.s32 2, %v1242
        %v1244 = vrot.slane %v199, %v1243
        %v1245 = vsub.f32 %v1211, %v1240
        %v1246 = vsub.f32 %v1211, %v1244
        %v1247 = vsub.f32 %v1215, %v1240
        %v1248 = vsub.f32 %v1215, %v1244
        %v1249 = vsub.f32 %v1219, %v1240
        %v1250 = vsub.f32 %v1219, %v1244
        %v1251 = vsub.f32 %v1223, %v1240
        %v1252 = vsub.f32 %v1223, %v1244
        %v1253 = vsub.f32 %v1227, %v1240
        %v1254 = vsub.f32 %v1227, %v1244
        %v1255 = vsub.f32 %v1231, %v1240
        %v1256 = vsub.f32 %v1231, %v1244
        %v1257 = vsub.f32 %v1235, %v1240
        %v1258 = vsub.f32 %v1235, %v1244
        %v1259 = vand.u32 2147483647, %v1245
        %v1260 = vand.u32 2147483647, %v1246
        %v1261 = vand.u32 2147483647, %v1247
        %v1262 = vand.u32 2147483647, %v1248
        %v1263 = vand.u32 2147483647, %v1249
        %v1264 = vand.u32 2147483647, %v1250
        %v1265 = vand.u32 2147483647, %v1251
        %v1266 = vand.u32 2147483647, %v1252
        %v1267 = vand.u32 2147483647, %v1253
        %v1268 = vand.u32 2147483647, %v1254
        %v1269 = vand.u32 2147483647, %v1255
        %v1270 = vand.u32 2147483647, %v1256
        %v1271 = vand.u32 2147483647, %v1257
        %v1272 = vand.u32 2147483647, %v1258
        %v1273 = vadd.f32 %v1195, %v1259
        %v1274 = vadd.f32 %v1196, %v1260
        %v1275 = vadd.f32 %v1197, %v1261
        %v1276 = vadd.f32 %v1198, %v1262
        %v1277 = vadd.f32 %v1199, %v1263
        %v1278 = vadd.f32 %v1200, %v1264
        %v1279 = vadd.f32 %v1201, %v1265
        %v1280 = vadd.f32 %v1202, %v1266
        %v1281 = vadd.f32 %v1203, %v1267
        %v1282 = vadd.f32 %v1204, %v1268
        %v1283 = vadd.f32 %v1205, %v1269
        %v1284 = vadd.f32 %v1206, %v1270
        %v1285 = vadd.f32 %v1207, %v1271
        %v1286 = vadd.f32 %v1208, %v1272
        %1287 = vset.pattern.permute.xlu0 11
        %1288 = vperm.xlu0 %1287, %v189
        %v1289 = vpop.permute.xlu0 %1288
        %1291 = vset.pattern.permute.xlu0 11
        %1292 = vperm.xlu0 %1291, %v190
        %v1293 = vpop.permute.xlu0 %1292
        %1295 = vset.pattern.permute.xlu0 11
        %1296 = vperm.xlu0 %1295, %v191
        %v1297 = vpop.permute.xlu0 %1296
        %1299 = vset.pattern.permute.xlu0 11
        %1300 = vperm.xlu0 %1299, %v192
        %v1301 = vpop.permute.xlu0 %1300
        %1303 = vset.pattern.permute.xlu0 11
        %1304 = vperm.xlu0 %1303, %v193
        %v1305 = vpop.permute.xlu0 %1304
        %1307 = vset.pattern.permute.xlu0 11
        %1308 = vperm.xlu0 %1307, %v194
        %v1309 = vpop.permute.xlu0 %1308
        %1311 = vset.pattern.permute.xlu0 11
        %1312 = vperm.xlu0 %1311, %v195
        %v1313 = vpop.permute.xlu0 %1312
        %v1315 = vlaneseq
        %v1316 = vshrl.u32 %v1315, 7
        %v1317 = vsub.s32 3, %v1316
        %v1318 = vrot.slane %v198, %v1317
        %v1319 = vlaneseq
        %v1320 = vshrl.u32 %v1319, 7
        %v1321 = vsub.s32 3, %v1320
        %v1322 = vrot.slane %v199, %v1321
        %v1323 = vsub.f32 %v1289, %v1318
        %v1324 = vsub.f32 %v1289, %v1322
        %v1325 = vsub.f32 %v1293, %v1318
        %v1326 = vsub.f32 %v1293, %v1322
        %v1327 = vsub.f32 %v1297, %v1318
        %v1328 = vsub.f32 %v1297, %v1322
        %v1329 = vsub.f32 %v1301, %v1318
        %v1330 = vsub.f32 %v1301, %v1322
        %v1331 = vsub.f32 %v1305, %v1318
        %v1332 = vsub.f32 %v1305, %v1322
        %v1333 = vsub.f32 %v1309, %v1318
        %v1334 = vsub.f32 %v1309, %v1322
        %v1335 = vsub.f32 %v1313, %v1318
        %v1336 = vsub.f32 %v1313, %v1322
        %v1337 = vand.u32 2147483647, %v1323
        %v1338 = vand.u32 2147483647, %v1324
        %v1339 = vand.u32 2147483647, %v1325
        %v1340 = vand.u32 2147483647, %v1326
        %v1341 = vand.u32 2147483647, %v1327
        %v1342 = vand.u32 2147483647, %v1328
        %v1343 = vand.u32 2147483647, %v1329
        %v1344 = vand.u32 2147483647, %v1330
        %v1345 = vand.u32 2147483647, %v1331
        %v1346 = vand.u32 2147483647, %v1332
        %v1347 = vand.u32 2147483647, %v1333
        %v1348 = vand.u32 2147483647, %v1334
        %v1349 = vand.u32 2147483647, %v1335
        %v1350 = vand.u32 2147483647, %v1336
        %v1351 = vadd.f32 %v1273, %v1337
        %v1352 = vadd.f32 %v1274, %v1338
        %v1353 = vadd.f32 %v1275, %v1339
        %v1354 = vadd.f32 %v1276, %v1340
        %v1355 = vadd.f32 %v1277, %v1341
        %v1356 = vadd.f32 %v1278, %v1342
        %v1357 = vadd.f32 %v1279, %v1343
        %v1358 = vadd.f32 %v1280, %v1344
        %v1359 = vadd.f32 %v1281, %v1345
        %v1360 = vadd.f32 %v1282, %v1346
        %v1361 = vadd.f32 %v1283, %v1347
        %v1362 = vadd.f32 %v1284, %v1348
        %v1363 = vadd.f32 %v1285, %v1349
        %v1364 = vadd.f32 %v1286, %v1350
        %1365 = vset.pattern.permute.xlu0 12
        %1366 = vperm.xlu0 %1365, %v189
        %v1367 = vpop.permute.xlu0 %1366
        %1369 = vset.pattern.permute.xlu0 12
        %1370 = vperm.xlu0 %1369, %v190
        %v1371 = vpop.permute.xlu0 %1370
        %1373 = vset.pattern.permute.xlu0 12
        %1374 = vperm.xlu0 %1373, %v191
        %v1375 = vpop.permute.xlu0 %1374
        %1377 = vset.pattern.permute.xlu0 12
        %1378 = vperm.xlu0 %1377, %v192
        %v1379 = vpop.permute.xlu0 %1378
        %1381 = vset.pattern.permute.xlu0 12
        %1382 = vperm.xlu0 %1381, %v193
        %v1383 = vpop.permute.xlu0 %1382
        %1385 = vset.pattern.permute.xlu0 12
        %1386 = vperm.xlu0 %1385, %v194
        %v1387 = vpop.permute.xlu0 %1386
        %1389 = vset.pattern.permute.xlu0 12
        %1390 = vperm.xlu0 %1389, %v195
        %v1391 = vpop.permute.xlu0 %1390
        %v1393 = vlaneseq
        %v1394 = vshrl.u32 %v1393, 7
        %v1395 = vsub.s32 4, %v1394
        %v1396 = vrot.slane %v198, %v1395
        %v1397 = vlaneseq
        %v1398 = vshrl.u32 %v1397, 7
        %v1399 = vsub.s32 4, %v1398
        %v1400 = vrot.slane %v199, %v1399
        %v1401 = vsub.f32 %v1367, %v1396
        %v1402 = vsub.f32 %v1367, %v1400
        %v1403 = vsub.f32 %v1371, %v1396
        %v1404 = vsub.f32 %v1371, %v1400
        %v1405 = vsub.f32 %v1375, %v1396
        %v1406 = vsub.f32 %v1375, %v1400
        %v1407 = vsub.f32 %v1379, %v1396
        %v1408 = vsub.f32 %v1379, %v1400
        %v1409 = vsub.f32 %v1383, %v1396
        %v1410 = vsub.f32 %v1383, %v1400
        %v1411 = vsub.f32 %v1387, %v1396
        %v1412 = vsub.f32 %v1387, %v1400
        %v1413 = vsub.f32 %v1391, %v1396
        %v1414 = vsub.f32 %v1391, %v1400
        %v1415 = vand.u32 2147483647, %v1401
        %v1416 = vand.u32 2147483647, %v1402
        %v1417 = vand.u32 2147483647, %v1403
        %v1418 = vand.u32 2147483647, %v1404
        %v1419 = vand.u32 2147483647, %v1405
        %v1420 = vand.u32 2147483647, %v1406
        %v1421 = vand.u32 2147483647, %v1407
        %v1422 = vand.u32 2147483647, %v1408
        %v1423 = vand.u32 2147483647, %v1409
        %v1424 = vand.u32 2147483647, %v1410
        %v1425 = vand.u32 2147483647, %v1411
        %v1426 = vand.u32 2147483647, %v1412
        %v1427 = vand.u32 2147483647, %v1413
        %v1428 = vand.u32 2147483647, %v1414
        %v1429 = vadd.f32 %v1351, %v1415
        %v1430 = vadd.f32 %v1352, %v1416
        %v1431 = vadd.f32 %v1353, %v1417
        %v1432 = vadd.f32 %v1354, %v1418
        %v1433 = vadd.f32 %v1355, %v1419
        %v1434 = vadd.f32 %v1356, %v1420
        %v1435 = vadd.f32 %v1357, %v1421
        %v1436 = vadd.f32 %v1358, %v1422
        %v1437 = vadd.f32 %v1359, %v1423
        %v1438 = vadd.f32 %v1360, %v1424
        %v1439 = vadd.f32 %v1361, %v1425
        %v1440 = vadd.f32 %v1362, %v1426
        %v1441 = vadd.f32 %v1363, %v1427
        %v1442 = vadd.f32 %v1364, %v1428
        %1443 = vset.pattern.permute.xlu0 13
        %1444 = vperm.xlu0 %1443, %v189
        %v1445 = vpop.permute.xlu0 %1444
        %1447 = vset.pattern.permute.xlu0 13
        %1448 = vperm.xlu0 %1447, %v190
        %v1449 = vpop.permute.xlu0 %1448
        %1451 = vset.pattern.permute.xlu0 13
        %1452 = vperm.xlu0 %1451, %v191
        %v1453 = vpop.permute.xlu0 %1452
        %1455 = vset.pattern.permute.xlu0 13
        %1456 = vperm.xlu0 %1455, %v192
        %v1457 = vpop.permute.xlu0 %1456
        %1459 = vset.pattern.permute.xlu0 13
        %1460 = vperm.xlu0 %1459, %v193
        %v1461 = vpop.permute.xlu0 %1460
        %1463 = vset.pattern.permute.xlu0 13
        %1464 = vperm.xlu0 %1463, %v194
        %v1465 = vpop.permute.xlu0 %1464
        %1467 = vset.pattern.permute.xlu0 13
        %1468 = vperm.xlu0 %1467, %v195
        %v1469 = vpop.permute.xlu0 %1468
        %v1471 = vlaneseq
        %v1472 = vshrl.u32 %v1471, 7
        %v1473 = vsub.s32 5, %v1472
        %v1474 = vrot.slane %v198, %v1473
        %v1475 = vlaneseq
        %v1476 = vshrl.u32 %v1475, 7
        %v1477 = vsub.s32 5, %v1476
        %v1478 = vrot.slane %v199, %v1477
        %v1479 = vsub.f32 %v1445, %v1474
        %v1480 = vsub.f32 %v1445, %v1478
        %v1481 = vsub.f32 %v1449, %v1474
        %v1482 = vsub.f32 %v1449, %v1478
        %v1483 = vsub.f32 %v1453, %v1474
        %v1484 = vsub.f32 %v1453, %v1478
        %v1485 = vsub.f32 %v1457, %v1474
        %v1486 = vsub.f32 %v1457, %v1478
        %v1487 = vsub.f32 %v1461, %v1474
        %v1488 = vsub.f32 %v1461, %v1478
        %v1489 = vsub.f32 %v1465, %v1474
        %v1490 = vsub.f32 %v1465, %v1478
        %v1491 = vsub.f32 %v1469, %v1474
        %v1492 = vsub.f32 %v1469, %v1478
        %v1493 = vand.u32 2147483647, %v1479
        %v1494 = vand.u32 2147483647, %v1480
        %v1495 = vand.u32 2147483647, %v1481
        %v1496 = vand.u32 2147483647, %v1482
        %v1497 = vand.u32 2147483647, %v1483
        %v1498 = vand.u32 2147483647, %v1484
        %v1499 = vand.u32 2147483647, %v1485
        %v1500 = vand.u32 2147483647, %v1486
        %v1501 = vand.u32 2147483647, %v1487
        %v1502 = vand.u32 2147483647, %v1488
        %v1503 = vand.u32 2147483647, %v1489
        %v1504 = vand.u32 2147483647, %v1490
        %v1505 = vand.u32 2147483647, %v1491
        %v1506 = vand.u32 2147483647, %v1492
        %v1507 = vadd.f32 %v1429, %v1493
        %v1508 = vadd.f32 %v1430, %v1494
        %v1509 = vadd.f32 %v1431, %v1495
        %v1510 = vadd.f32 %v1432, %v1496
        %v1511 = vadd.f32 %v1433, %v1497
        %v1512 = vadd.f32 %v1434, %v1498
        %v1513 = vadd.f32 %v1435, %v1499
        %v1514 = vadd.f32 %v1436, %v1500
        %v1515 = vadd.f32 %v1437, %v1501
        %v1516 = vadd.f32 %v1438, %v1502
        %v1517 = vadd.f32 %v1439, %v1503
        %v1518 = vadd.f32 %v1440, %v1504
        %v1519 = vadd.f32 %v1441, %v1505
        %v1520 = vadd.f32 %v1442, %v1506
        %1521 = vset.pattern.permute.xlu0 14
        %1522 = vperm.xlu0 %1521, %v189
        %v1523 = vpop.permute.xlu0 %1522
        %1525 = vset.pattern.permute.xlu0 14
        %1526 = vperm.xlu0 %1525, %v190
        %v1527 = vpop.permute.xlu0 %1526
        %1529 = vset.pattern.permute.xlu0 14
        %1530 = vperm.xlu0 %1529, %v191
        %v1531 = vpop.permute.xlu0 %1530
        %1533 = vset.pattern.permute.xlu0 14
        %1534 = vperm.xlu0 %1533, %v192
        %v1535 = vpop.permute.xlu0 %1534
        %1537 = vset.pattern.permute.xlu0 14
        %1538 = vperm.xlu0 %1537, %v193
        %v1539 = vpop.permute.xlu0 %1538
        %1541 = vset.pattern.permute.xlu0 14
        %1542 = vperm.xlu0 %1541, %v194
        %v1543 = vpop.permute.xlu0 %1542
        %1545 = vset.pattern.permute.xlu0 14
        %1546 = vperm.xlu0 %1545, %v195
        %v1547 = vpop.permute.xlu0 %1546
        %v1549 = vlaneseq
        %v1550 = vshrl.u32 %v1549, 7
        %v1551 = vsub.s32 6, %v1550
        %v1552 = vrot.slane %v198, %v1551
        %v1553 = vlaneseq
        %v1554 = vshrl.u32 %v1553, 7
        %v1555 = vsub.s32 6, %v1554
        %v1556 = vrot.slane %v199, %v1555
        %v1557 = vsub.f32 %v1523, %v1552
        %v1558 = vsub.f32 %v1523, %v1556
        %v1559 = vsub.f32 %v1527, %v1552
        %v1560 = vsub.f32 %v1527, %v1556
        %v1561 = vsub.f32 %v1531, %v1552
        %v1562 = vsub.f32 %v1531, %v1556
        %v1563 = vsub.f32 %v1535, %v1552
        %v1564 = vsub.f32 %v1535, %v1556
        %v1565 = vsub.f32 %v1539, %v1552
        %v1566 = vsub.f32 %v1539, %v1556
        %v1567 = vsub.f32 %v1543, %v1552
        %v1568 = vsub.f32 %v1543, %v1556
        %v1569 = vsub.f32 %v1547, %v1552
        %v1570 = vsub.f32 %v1547, %v1556
        %v1571 = vand.u32 2147483647, %v1557
        %v1572 = vand.u32 2147483647, %v1558
        %v1573 = vand.u32 2147483647, %v1559
        %v1574 = vand.u32 2147483647, %v1560
        %v1575 = vand.u32 2147483647, %v1561
        %v1576 = vand.u32 2147483647, %v1562
        %v1577 = vand.u32 2147483647, %v1563
        %v1578 = vand.u32 2147483647, %v1564
        %v1579 = vand.u32 2147483647, %v1565
        %v1580 = vand.u32 2147483647, %v1566
        %v1581 = vand.u32 2147483647, %v1567
        %v1582 = vand.u32 2147483647, %v1568
        %v1583 = vand.u32 2147483647, %v1569
        %v1584 = vand.u32 2147483647, %v1570
        %v1585 = vadd.f32 %v1507, %v1571
        %v1586 = vadd.f32 %v1508, %v1572
        %v1587 = vadd.f32 %v1509, %v1573
        %v1588 = vadd.f32 %v1510, %v1574
        %v1589 = vadd.f32 %v1511, %v1575
        %v1590 = vadd.f32 %v1512, %v1576
        %v1591 = vadd.f32 %v1513, %v1577
        %v1592 = vadd.f32 %v1514, %v1578
        %v1593 = vadd.f32 %v1515, %v1579
        %v1594 = vadd.f32 %v1516, %v1580
        %v1595 = vadd.f32 %v1517, %v1581
        %v1596 = vadd.f32 %v1518, %v1582
        %v1597 = vadd.f32 %v1519, %v1583
        %v1598 = vadd.f32 %v1520, %v1584
        %1599 = vset.pattern.permute.xlu0 15
        %1600 = vperm.xlu0 %1599, %v189
        %v1601 = vpop.permute.xlu0 %1600
        %1603 = vset.pattern.permute.xlu0 15
        %1604 = vperm.xlu0 %1603, %v190
        %v1605 = vpop.permute.xlu0 %1604
        %1607 = vset.pattern.permute.xlu0 15
        %1608 = vperm.xlu0 %1607, %v191
        %v1609 = vpop.permute.xlu0 %1608
        %1611 = vset.pattern.permute.xlu0 15
        %1612 = vperm.xlu0 %1611, %v192
        %v1613 = vpop.permute.xlu0 %1612
        %1615 = vset.pattern.permute.xlu0 15
        %1616 = vperm.xlu0 %1615, %v193
        %v1617 = vpop.permute.xlu0 %1616
        %1619 = vset.pattern.permute.xlu0 15
        %1620 = vperm.xlu0 %1619, %v194
        %v1621 = vpop.permute.xlu0 %1620
        %1623 = vset.pattern.permute.xlu0 15
        %1624 = vperm.xlu0 %1623, %v195
        %v1625 = vpop.permute.xlu0 %1624
        %v1627 = vlaneseq
        %v1628 = vshrl.u32 %v1627, 7
        %v1629 = vsub.s32 7, %v1628
        %v1630 = vrot.slane %v198, %v1629
        %v1631 = vlaneseq
        %v1632 = vshrl.u32 %v1631, 7
        %v1633 = vsub.s32 7, %v1632
        %v1634 = vrot.slane %v199, %v1633
        %v1635 = vsub.f32 %v1601, %v1630
        %v1636 = vsub.f32 %v1601, %v1634
        %v1637 = vsub.f32 %v1605, %v1630
        %v1638 = vsub.f32 %v1605, %v1634
        %v1639 = vsub.f32 %v1609, %v1630
        %v1640 = vsub.f32 %v1609, %v1634
        %v1641 = vsub.f32 %v1613, %v1630
        %v1642 = vsub.f32 %v1613, %v1634
        %v1643 = vsub.f32 %v1617, %v1630
        %v1644 = vsub.f32 %v1617, %v1634
        %v1645 = vsub.f32 %v1621, %v1630
        %v1646 = vsub.f32 %v1621, %v1634
        %v1647 = vsub.f32 %v1625, %v1630
        %v1648 = vsub.f32 %v1625, %v1634
        %v1649 = vand.u32 2147483647, %v1635
        %v1650 = vand.u32 2147483647, %v1636
        %v1651 = vand.u32 2147483647, %v1637
        %v1652 = vand.u32 2147483647, %v1638
        %v1653 = vand.u32 2147483647, %v1639
        %v1654 = vand.u32 2147483647, %v1640
        %v1655 = vand.u32 2147483647, %v1641
        %v1656 = vand.u32 2147483647, %v1642
        %v1657 = vand.u32 2147483647, %v1643
        %v1658 = vand.u32 2147483647, %v1644
        %v1659 = vand.u32 2147483647, %v1645
        %v1660 = vand.u32 2147483647, %v1646
        %v1661 = vand.u32 2147483647, %v1647
        %v1662 = vand.u32 2147483647, %v1648
        %v1663 = vadd.f32 %v1585, %v1649
        %v1664 = vadd.f32 %v1586, %v1650
        %v1665 = vadd.f32 %v1587, %v1651
        %v1666 = vadd.f32 %v1588, %v1652
        %v1667 = vadd.f32 %v1589, %v1653
        %v1668 = vadd.f32 %v1590, %v1654
        %v1669 = vadd.f32 %v1591, %v1655
        %v1670 = vadd.f32 %v1592, %v1656
        %v1671 = vadd.f32 %v1593, %v1657
        %v1672 = vadd.f32 %v1594, %v1658
        %v1673 = vadd.f32 %v1595, %v1659
        %v1674 = vadd.f32 %v1596, %v1660
        %v1675 = vadd.f32 %v1597, %v1661
        %v1676 = vadd.f32 %v1598, %v1662
        %1677 = vset.pattern.permute.xlu0 16
        %1678 = vperm.xlu0 %1677, %v189
        %v1679 = vpop.permute.xlu0 %1678
        %1681 = vset.pattern.permute.xlu0 16
        %1682 = vperm.xlu0 %1681, %v190
        %v1683 = vpop.permute.xlu0 %1682
        %1685 = vset.pattern.permute.xlu0 16
        %1686 = vperm.xlu0 %1685, %v191
        %v1687 = vpop.permute.xlu0 %1686
        %1689 = vset.pattern.permute.xlu0 16
        %1690 = vperm.xlu0 %1689, %v192
        %v1691 = vpop.permute.xlu0 %1690
        %1693 = vset.pattern.permute.xlu0 16
        %1694 = vperm.xlu0 %1693, %v193
        %v1695 = vpop.permute.xlu0 %1694
        %1697 = vset.pattern.permute.xlu0 16
        %1698 = vperm.xlu0 %1697, %v194
        %v1699 = vpop.permute.xlu0 %1698
        %1701 = vset.pattern.permute.xlu0 16
        %1702 = vperm.xlu0 %1701, %v195
        %v1703 = vpop.permute.xlu0 %1702
        %v1705 = vlaneseq
        %v1706 = vshrl.u32 %v1705, 7
        %v1707 = vsub.s32 0, %v1706
        %v1708 = vrot.slane %v200, %v1707
        %v1709 = vlaneseq
        %v1710 = vshrl.u32 %v1709, 7
        %v1711 = vsub.s32 0, %v1710
        %v1712 = vrot.slane %v201, %v1711
        %v1713 = vsub.f32 %v1679, %v1708
        %v1714 = vsub.f32 %v1679, %v1712
        %v1715 = vsub.f32 %v1683, %v1708
        %v1716 = vsub.f32 %v1683, %v1712
        %v1717 = vsub.f32 %v1687, %v1708
        %v1718 = vsub.f32 %v1687, %v1712
        %v1719 = vsub.f32 %v1691, %v1708
        %v1720 = vsub.f32 %v1691, %v1712
        %v1721 = vsub.f32 %v1695, %v1708
        %v1722 = vsub.f32 %v1695, %v1712
        %v1723 = vsub.f32 %v1699, %v1708
        %v1724 = vsub.f32 %v1699, %v1712
        %v1725 = vsub.f32 %v1703, %v1708
        %v1726 = vsub.f32 %v1703, %v1712
        %v1727 = vand.u32 2147483647, %v1713
        %v1728 = vand.u32 2147483647, %v1714
        %v1729 = vand.u32 2147483647, %v1715
        %v1730 = vand.u32 2147483647, %v1716
        %v1731 = vand.u32 2147483647, %v1717
        %v1732 = vand.u32 2147483647, %v1718
        %v1733 = vand.u32 2147483647, %v1719
        %v1734 = vand.u32 2147483647, %v1720
        %v1735 = vand.u32 2147483647, %v1721
        %v1736 = vand.u32 2147483647, %v1722
        %v1737 = vand.u32 2147483647, %v1723
        %v1738 = vand.u32 2147483647, %v1724
        %v1739 = vand.u32 2147483647, %v1725
        %v1740 = vand.u32 2147483647, %v1726
        %v1741 = vadd.f32 %v1663, %v1727
        %v1742 = vadd.f32 %v1664, %v1728
        %v1743 = vadd.f32 %v1665, %v1729
        %v1744 = vadd.f32 %v1666, %v1730
        %v1745 = vadd.f32 %v1667, %v1731
        %v1746 = vadd.f32 %v1668, %v1732
        %v1747 = vadd.f32 %v1669, %v1733
        %v1748 = vadd.f32 %v1670, %v1734
        %v1749 = vadd.f32 %v1671, %v1735
        %v1750 = vadd.f32 %v1672, %v1736
        %v1751 = vadd.f32 %v1673, %v1737
        %v1752 = vadd.f32 %v1674, %v1738
        %v1753 = vadd.f32 %v1675, %v1739
        %v1754 = vadd.f32 %v1676, %v1740
        %1755 = vset.pattern.permute.xlu0 17
        %1756 = vperm.xlu0 %1755, %v189
        %v1757 = vpop.permute.xlu0 %1756
        %1759 = vset.pattern.permute.xlu0 17
        %1760 = vperm.xlu0 %1759, %v190
        %v1761 = vpop.permute.xlu0 %1760
        %1763 = vset.pattern.permute.xlu0 17
        %1764 = vperm.xlu0 %1763, %v191
        %v1765 = vpop.permute.xlu0 %1764
        %1767 = vset.pattern.permute.xlu0 17
        %1768 = vperm.xlu0 %1767, %v192
        %v1769 = vpop.permute.xlu0 %1768
        %1771 = vset.pattern.permute.xlu0 17
        %1772 = vperm.xlu0 %1771, %v193
        %v1773 = vpop.permute.xlu0 %1772
        %1775 = vset.pattern.permute.xlu0 17
        %1776 = vperm.xlu0 %1775, %v194
        %v1777 = vpop.permute.xlu0 %1776
        %1779 = vset.pattern.permute.xlu0 17
        %1780 = vperm.xlu0 %1779, %v195
        %v1781 = vpop.permute.xlu0 %1780
        %v1783 = vlaneseq
        %v1784 = vshrl.u32 %v1783, 7
        %v1785 = vsub.s32 1, %v1784
        %v1786 = vrot.slane %v200, %v1785
        %v1787 = vlaneseq
        %v1788 = vshrl.u32 %v1787, 7
        %v1789 = vsub.s32 1, %v1788
        %v1790 = vrot.slane %v201, %v1789
        %v1791 = vsub.f32 %v1757, %v1786
        %v1792 = vsub.f32 %v1757, %v1790
        %v1793 = vsub.f32 %v1761, %v1786
        %v1794 = vsub.f32 %v1761, %v1790
        %v1795 = vsub.f32 %v1765, %v1786
        %v1796 = vsub.f32 %v1765, %v1790
        %v1797 = vsub.f32 %v1769, %v1786
        %v1798 = vsub.f32 %v1769, %v1790
        %v1799 = vsub.f32 %v1773, %v1786
        %v1800 = vsub.f32 %v1773, %v1790
        %v1801 = vsub.f32 %v1777, %v1786
        %v1802 = vsub.f32 %v1777, %v1790
        %v1803 = vsub.f32 %v1781, %v1786
        %v1804 = vsub.f32 %v1781, %v1790
        %v1805 = vand.u32 2147483647, %v1791
        %v1806 = vand.u32 2147483647, %v1792
        %v1807 = vand.u32 2147483647, %v1793
        %v1808 = vand.u32 2147483647, %v1794
        %v1809 = vand.u32 2147483647, %v1795
        %v1810 = vand.u32 2147483647, %v1796
        %v1811 = vand.u32 2147483647, %v1797
        %v1812 = vand.u32 2147483647, %v1798
        %v1813 = vand.u32 2147483647, %v1799
        %v1814 = vand.u32 2147483647, %v1800
        %v1815 = vand.u32 2147483647, %v1801
        %v1816 = vand.u32 2147483647, %v1802
        %v1817 = vand.u32 2147483647, %v1803
        %v1818 = vand.u32 2147483647, %v1804
        %v1819 = vadd.f32 %v1741, %v1805
        %v1820 = vadd.f32 %v1742, %v1806
        %v1821 = vadd.f32 %v1743, %v1807
        %v1822 = vadd.f32 %v1744, %v1808
        %v1823 = vadd.f32 %v1745, %v1809
        %v1824 = vadd.f32 %v1746, %v1810
        %v1825 = vadd.f32 %v1747, %v1811
        %v1826 = vadd.f32 %v1748, %v1812
        %v1827 = vadd.f32 %v1749, %v1813
        %v1828 = vadd.f32 %v1750, %v1814
        %v1829 = vadd.f32 %v1751, %v1815
        %v1830 = vadd.f32 %v1752, %v1816
        %v1831 = vadd.f32 %v1753, %v1817
        %v1832 = vadd.f32 %v1754, %v1818
        %1833 = vset.pattern.permute.xlu0 18
        %1834 = vperm.xlu0 %1833, %v189
        %v1835 = vpop.permute.xlu0 %1834
        %1837 = vset.pattern.permute.xlu0 18
        %1838 = vperm.xlu0 %1837, %v190
        %v1839 = vpop.permute.xlu0 %1838
        %1841 = vset.pattern.permute.xlu0 18
        %1842 = vperm.xlu0 %1841, %v191
        %v1843 = vpop.permute.xlu0 %1842
        %1845 = vset.pattern.permute.xlu0 18
        %1846 = vperm.xlu0 %1845, %v192
        %v1847 = vpop.permute.xlu0 %1846
        %1849 = vset.pattern.permute.xlu0 18
        %1850 = vperm.xlu0 %1849, %v193
        %v1851 = vpop.permute.xlu0 %1850
        %1853 = vset.pattern.permute.xlu0 18
        %1854 = vperm.xlu0 %1853, %v194
        %v1855 = vpop.permute.xlu0 %1854
        %1857 = vset.pattern.permute.xlu0 18
        %1858 = vperm.xlu0 %1857, %v195
        %v1859 = vpop.permute.xlu0 %1858
        %v1861 = vlaneseq
        %v1862 = vshrl.u32 %v1861, 7
        %v1863 = vsub.s32 2, %v1862
        %v1864 = vrot.slane %v200, %v1863
        %v1865 = vlaneseq
        %v1866 = vshrl.u32 %v1865, 7
        %v1867 = vsub.s32 2, %v1866
        %v1868 = vrot.slane %v201, %v1867
        %v1869 = vsub.f32 %v1835, %v1864
        %v1870 = vsub.f32 %v1835, %v1868
        %v1871 = vsub.f32 %v1839, %v1864
        %v1872 = vsub.f32 %v1839, %v1868
        %v1873 = vsub.f32 %v1843, %v1864
        %v1874 = vsub.f32 %v1843, %v1868
        %v1875 = vsub.f32 %v1847, %v1864
        %v1876 = vsub.f32 %v1847, %v1868
        %v1877 = vsub.f32 %v1851, %v1864
        %v1878 = vsub.f32 %v1851, %v1868
        %v1879 = vsub.f32 %v1855, %v1864
        %v1880 = vsub.f32 %v1855, %v1868
        %v1881 = vsub.f32 %v1859, %v1864
        %v1882 = vsub.f32 %v1859, %v1868
        %v1883 = vand.u32 2147483647, %v1869
        %v1884 = vand.u32 2147483647, %v1870
        %v1885 = vand.u32 2147483647, %v1871
        %v1886 = vand.u32 2147483647, %v1872
        %v1887 = vand.u32 2147483647, %v1873
        %v1888 = vand.u32 2147483647, %v1874
        %v1889 = vand.u32 2147483647, %v1875
        %v1890 = vand.u32 2147483647, %v1876
        %v1891 = vand.u32 2147483647, %v1877
        %v1892 = vand.u32 2147483647, %v1878
        %v1893 = vand.u32 2147483647, %v1879
        %v1894 = vand.u32 2147483647, %v1880
        %v1895 = vand.u32 2147483647, %v1881
        %v1896 = vand.u32 2147483647, %v1882
        %v1897 = vadd.f32 %v1819, %v1883
        %v1898 = vadd.f32 %v1820, %v1884
        %v1899 = vadd.f32 %v1821, %v1885
        %v1900 = vadd.f32 %v1822, %v1886
        %v1901 = vadd.f32 %v1823, %v1887
        %v1902 = vadd.f32 %v1824, %v1888
        %v1903 = vadd.f32 %v1825, %v1889
        %v1904 = vadd.f32 %v1826, %v1890
        %v1905 = vadd.f32 %v1827, %v1891
        %v1906 = vadd.f32 %v1828, %v1892
        %v1907 = vadd.f32 %v1829, %v1893
        %v1908 = vadd.f32 %v1830, %v1894
        %v1909 = vadd.f32 %v1831, %v1895
        %v1910 = vadd.f32 %v1832, %v1896
        %1911 = vset.pattern.permute.xlu0 19
        %1912 = vperm.xlu0 %1911, %v189
        %v1913 = vpop.permute.xlu0 %1912
        %1915 = vset.pattern.permute.xlu0 19
        %1916 = vperm.xlu0 %1915, %v190
        %v1917 = vpop.permute.xlu0 %1916
        %1919 = vset.pattern.permute.xlu0 19
        %1920 = vperm.xlu0 %1919, %v191
        %v1921 = vpop.permute.xlu0 %1920
        %1923 = vset.pattern.permute.xlu0 19
        %1924 = vperm.xlu0 %1923, %v192
        %v1925 = vpop.permute.xlu0 %1924
        %1927 = vset.pattern.permute.xlu0 19
        %1928 = vperm.xlu0 %1927, %v193
        %v1929 = vpop.permute.xlu0 %1928
        %1931 = vset.pattern.permute.xlu0 19
        %1932 = vperm.xlu0 %1931, %v194
        %v1933 = vpop.permute.xlu0 %1932
        %1935 = vset.pattern.permute.xlu0 19
        %1936 = vperm.xlu0 %1935, %v195
        %v1937 = vpop.permute.xlu0 %1936
        %v1939 = vlaneseq
        %v1940 = vshrl.u32 %v1939, 7
        %v1941 = vsub.s32 3, %v1940
        %v1942 = vrot.slane %v200, %v1941
        %v1943 = vlaneseq
        %v1944 = vshrl.u32 %v1943, 7
        %v1945 = vsub.s32 3, %v1944
        %v1946 = vrot.slane %v201, %v1945
        %v1947 = vsub.f32 %v1913, %v1942
        %v1948 = vsub.f32 %v1913, %v1946
        %v1949 = vsub.f32 %v1917, %v1942
        %v1950 = vsub.f32 %v1917, %v1946
        %v1951 = vsub.f32 %v1921, %v1942
        %v1952 = vsub.f32 %v1921, %v1946
        %v1953 = vsub.f32 %v1925, %v1942
        %v1954 = vsub.f32 %v1925, %v1946
        %v1955 = vsub.f32 %v1929, %v1942
        %v1956 = vsub.f32 %v1929, %v1946
        %v1957 = vsub.f32 %v1933, %v1942
        %v1958 = vsub.f32 %v1933, %v1946
        %v1959 = vsub.f32 %v1937, %v1942
        %v1960 = vsub.f32 %v1937, %v1946
        %v1961 = vand.u32 2147483647, %v1947
        %v1962 = vand.u32 2147483647, %v1948
        %v1963 = vand.u32 2147483647, %v1949
        %v1964 = vand.u32 2147483647, %v1950
        %v1965 = vand.u32 2147483647, %v1951
        %v1966 = vand.u32 2147483647, %v1952
        %v1967 = vand.u32 2147483647, %v1953
        %v1968 = vand.u32 2147483647, %v1954
        %v1969 = vand.u32 2147483647, %v1955
        %v1970 = vand.u32 2147483647, %v1956
        %v1971 = vand.u32 2147483647, %v1957
        %v1972 = vand.u32 2147483647, %v1958
        %v1973 = vand.u32 2147483647, %v1959
        %v1974 = vand.u32 2147483647, %v1960
        %v1975 = vadd.f32 %v1897, %v1961
        %v1976 = vadd.f32 %v1898, %v1962
        %v1977 = vadd.f32 %v1899, %v1963
        %v1978 = vadd.f32 %v1900, %v1964
        %v1979 = vadd.f32 %v1901, %v1965
        %v1980 = vadd.f32 %v1902, %v1966
        %v1981 = vadd.f32 %v1903, %v1967
        %v1982 = vadd.f32 %v1904, %v1968
        %v1983 = vadd.f32 %v1905, %v1969
        %v1984 = vadd.f32 %v1906, %v1970
        %v1985 = vadd.f32 %v1907, %v1971
        %v1986 = vadd.f32 %v1908, %v1972
        %v1987 = vadd.f32 %v1909, %v1973
        %v1988 = vadd.f32 %v1910, %v1974
        %1989 = vset.pattern.permute.xlu0 20
        %1990 = vperm.xlu0 %1989, %v189
        %v1991 = vpop.permute.xlu0 %1990
        %1993 = vset.pattern.permute.xlu0 20
        %1994 = vperm.xlu0 %1993, %v190
        %v1995 = vpop.permute.xlu0 %1994
        %1997 = vset.pattern.permute.xlu0 20
        %1998 = vperm.xlu0 %1997, %v191
        %v1999 = vpop.permute.xlu0 %1998
        %2001 = vset.pattern.permute.xlu0 20
        %2002 = vperm.xlu0 %2001, %v192
        %v2003 = vpop.permute.xlu0 %2002
        %2005 = vset.pattern.permute.xlu0 20
        %2006 = vperm.xlu0 %2005, %v193
        %v2007 = vpop.permute.xlu0 %2006
        %2009 = vset.pattern.permute.xlu0 20
        %2010 = vperm.xlu0 %2009, %v194
        %v2011 = vpop.permute.xlu0 %2010
        %2013 = vset.pattern.permute.xlu0 20
        %2014 = vperm.xlu0 %2013, %v195
        %v2015 = vpop.permute.xlu0 %2014
        %v2017 = vlaneseq
        %v2018 = vshrl.u32 %v2017, 7
        %v2019 = vsub.s32 4, %v2018
        %v2020 = vrot.slane %v200, %v2019
        %v2021 = vlaneseq
        %v2022 = vshrl.u32 %v2021, 7
        %v2023 = vsub.s32 4, %v2022
        %v2024 = vrot.slane %v201, %v2023
        %v2025 = vsub.f32 %v1991, %v2020
        %v2026 = vsub.f32 %v1991, %v2024
        %v2027 = vsub.f32 %v1995, %v2020
        %v2028 = vsub.f32 %v1995, %v2024
        %v2029 = vsub.f32 %v1999, %v2020
        %v2030 = vsub.f32 %v1999, %v2024
        %v2031 = vsub.f32 %v2003, %v2020
        %v2032 = vsub.f32 %v2003, %v2024
        %v2033 = vsub.f32 %v2007, %v2020
        %v2034 = vsub.f32 %v2007, %v2024
        %v2035 = vsub.f32 %v2011, %v2020
        %v2036 = vsub.f32 %v2011, %v2024
        %v2037 = vsub.f32 %v2015, %v2020
        %v2038 = vsub.f32 %v2015, %v2024
        %v2039 = vand.u32 2147483647, %v2025
        %v2040 = vand.u32 2147483647, %v2026
        %v2041 = vand.u32 2147483647, %v2027
        %v2042 = vand.u32 2147483647, %v2028
        %v2043 = vand.u32 2147483647, %v2029
        %v2044 = vand.u32 2147483647, %v2030
        %v2045 = vand.u32 2147483647, %v2031
        %v2046 = vand.u32 2147483647, %v2032
        %v2047 = vand.u32 2147483647, %v2033
        %v2048 = vand.u32 2147483647, %v2034
        %v2049 = vand.u32 2147483647, %v2035
        %v2050 = vand.u32 2147483647, %v2036
        %v2051 = vand.u32 2147483647, %v2037
        %v2052 = vand.u32 2147483647, %v2038
        %v2053 = vadd.f32 %v1975, %v2039
        %v2054 = vadd.f32 %v1976, %v2040
        %v2055 = vadd.f32 %v1977, %v2041
        %v2056 = vadd.f32 %v1978, %v2042
        %v2057 = vadd.f32 %v1979, %v2043
        %v2058 = vadd.f32 %v1980, %v2044
        %v2059 = vadd.f32 %v1981, %v2045
        %v2060 = vadd.f32 %v1982, %v2046
        %v2061 = vadd.f32 %v1983, %v2047
        %v2062 = vadd.f32 %v1984, %v2048
        %v2063 = vadd.f32 %v1985, %v2049
        %v2064 = vadd.f32 %v1986, %v2050
        %v2065 = vadd.f32 %v1987, %v2051
        %v2066 = vadd.f32 %v1988, %v2052
        %2067 = vset.pattern.permute.xlu0 21
        %2068 = vperm.xlu0 %2067, %v189
        %v2069 = vpop.permute.xlu0 %2068
        %2071 = vset.pattern.permute.xlu0 21
        %2072 = vperm.xlu0 %2071, %v190
        %v2073 = vpop.permute.xlu0 %2072
        %2075 = vset.pattern.permute.xlu0 21
        %2076 = vperm.xlu0 %2075, %v191
        %v2077 = vpop.permute.xlu0 %2076
        %2079 = vset.pattern.permute.xlu0 21
        %2080 = vperm.xlu0 %2079, %v192
        %v2081 = vpop.permute.xlu0 %2080
        %2083 = vset.pattern.permute.xlu0 21
        %2084 = vperm.xlu0 %2083, %v193
        %v2085 = vpop.permute.xlu0 %2084
        %2087 = vset.pattern.permute.xlu0 21
        %2088 = vperm.xlu0 %2087, %v194
        %v2089 = vpop.permute.xlu0 %2088
        %2091 = vset.pattern.permute.xlu0 21
        %2092 = vperm.xlu0 %2091, %v195
        %v2093 = vpop.permute.xlu0 %2092
        %v2095 = vlaneseq
        %v2096 = vshrl.u32 %v2095, 7
        %v2097 = vsub.s32 5, %v2096
        %v2098 = vrot.slane %v200, %v2097
        %v2099 = vlaneseq
        %v2100 = vshrl.u32 %v2099, 7
        %v2101 = vsub.s32 5, %v2100
        %v2102 = vrot.slane %v201, %v2101
        %v2103 = vsub.f32 %v2069, %v2098
        %v2104 = vsub.f32 %v2069, %v2102
        %v2105 = vsub.f32 %v2073, %v2098
        %v2106 = vsub.f32 %v2073, %v2102
        %v2107 = vsub.f32 %v2077, %v2098
        %v2108 = vsub.f32 %v2077, %v2102
        %v2109 = vsub.f32 %v2081, %v2098
        %v2110 = vsub.f32 %v2081, %v2102
        %v2111 = vsub.f32 %v2085, %v2098
        %v2112 = vsub.f32 %v2085, %v2102
        %v2113 = vsub.f32 %v2089, %v2098
        %v2114 = vsub.f32 %v2089, %v2102
        %v2115 = vsub.f32 %v2093, %v2098
        %v2116 = vsub.f32 %v2093, %v2102
        %v2117 = vand.u32 2147483647, %v2103
        %v2118 = vand.u32 2147483647, %v2104
        %v2119 = vand.u32 2147483647, %v2105
        %v2120 = vand.u32 2147483647, %v2106
        %v2121 = vand.u32 2147483647, %v2107
        %v2122 = vand.u32 2147483647, %v2108
        %v2123 = vand.u32 2147483647, %v2109
        %v2124 = vand.u32 2147483647, %v2110
        %v2125 = vand.u32 2147483647, %v2111
        %v2126 = vand.u32 2147483647, %v2112
        %v2127 = vand.u32 2147483647, %v2113
        %v2128 = vand.u32 2147483647, %v2114
        %v2129 = vand.u32 2147483647, %v2115
        %v2130 = vand.u32 2147483647, %v2116
        %v2131 = vadd.f32 %v2053, %v2117
        %v2132 = vadd.f32 %v2054, %v2118
        %v2133 = vadd.f32 %v2055, %v2119
        %v2134 = vadd.f32 %v2056, %v2120
        %v2135 = vadd.f32 %v2057, %v2121
        %v2136 = vadd.f32 %v2058, %v2122
        %v2137 = vadd.f32 %v2059, %v2123
        %v2138 = vadd.f32 %v2060, %v2124
        %v2139 = vadd.f32 %v2061, %v2125
        %v2140 = vadd.f32 %v2062, %v2126
        %v2141 = vadd.f32 %v2063, %v2127
        %v2142 = vadd.f32 %v2064, %v2128
        %v2143 = vadd.f32 %v2065, %v2129
        %v2144 = vadd.f32 %v2066, %v2130
        %2145 = vset.pattern.permute.xlu0 22
        %2146 = vperm.xlu0 %2145, %v189
        %v2147 = vpop.permute.xlu0 %2146
        %2149 = vset.pattern.permute.xlu0 22
        %2150 = vperm.xlu0 %2149, %v190
        %v2151 = vpop.permute.xlu0 %2150
        %2153 = vset.pattern.permute.xlu0 22
        %2154 = vperm.xlu0 %2153, %v191
        %v2155 = vpop.permute.xlu0 %2154
        %2157 = vset.pattern.permute.xlu0 22
        %2158 = vperm.xlu0 %2157, %v192
        %v2159 = vpop.permute.xlu0 %2158
        %2161 = vset.pattern.permute.xlu0 22
        %2162 = vperm.xlu0 %2161, %v193
        %v2163 = vpop.permute.xlu0 %2162
        %2165 = vset.pattern.permute.xlu0 22
        %2166 = vperm.xlu0 %2165, %v194
        %v2167 = vpop.permute.xlu0 %2166
        %2169 = vset.pattern.permute.xlu0 22
        %2170 = vperm.xlu0 %2169, %v195
        %v2171 = vpop.permute.xlu0 %2170
        %v2173 = vlaneseq
        %v2174 = vshrl.u32 %v2173, 7
        %v2175 = vsub.s32 6, %v2174
        %v2176 = vrot.slane %v200, %v2175
        %v2177 = vlaneseq
        %v2178 = vshrl.u32 %v2177, 7
        %v2179 = vsub.s32 6, %v2178
        %v2180 = vrot.slane %v201, %v2179
        %v2181 = vsub.f32 %v2147, %v2176
        %v2182 = vsub.f32 %v2147, %v2180
        %v2183 = vsub.f32 %v2151, %v2176
        %v2184 = vsub.f32 %v2151, %v2180
        %v2185 = vsub.f32 %v2155, %v2176
        %v2186 = vsub.f32 %v2155, %v2180
        %v2187 = vsub.f32 %v2159, %v2176
        %v2188 = vsub.f32 %v2159, %v2180
        %v2189 = vsub.f32 %v2163, %v2176
        %v2190 = vsub.f32 %v2163, %v2180
        %v2191 = vsub.f32 %v2167, %v2176
        %v2192 = vsub.f32 %v2167, %v2180
        %v2193 = vsub.f32 %v2171, %v2176
        %v2194 = vsub.f32 %v2171, %v2180
        %v2195 = vand.u32 2147483647, %v2181
        %v2196 = vand.u32 2147483647, %v2182
        %v2197 = vand.u32 2147483647, %v2183
        %v2198 = vand.u32 2147483647, %v2184
        %v2199 = vand.u32 2147483647, %v2185
        %v2200 = vand.u32 2147483647, %v2186
        %v2201 = vand.u32 2147483647, %v2187
        %v2202 = vand.u32 2147483647, %v2188
        %v2203 = vand.u32 2147483647, %v2189
        %v2204 = vand.u32 2147483647, %v2190
        %v2205 = vand.u32 2147483647, %v2191
        %v2206 = vand.u32 2147483647, %v2192
        %v2207 = vand.u32 2147483647, %v2193
        %v2208 = vand.u32 2147483647, %v2194
        %v2209 = vadd.f32 %v2131, %v2195
        %v2210 = vadd.f32 %v2132, %v2196
        %v2211 = vadd.f32 %v2133, %v2197
        %v2212 = vadd.f32 %v2134, %v2198
        %v2213 = vadd.f32 %v2135, %v2199
        %v2214 = vadd.f32 %v2136, %v2200
        %v2215 = vadd.f32 %v2137, %v2201
        %v2216 = vadd.f32 %v2138, %v2202
        %v2217 = vadd.f32 %v2139, %v2203
        %v2218 = vadd.f32 %v2140, %v2204
        %v2219 = vadd.f32 %v2141, %v2205
        %v2220 = vadd.f32 %v2142, %v2206
        %v2221 = vadd.f32 %v2143, %v2207
        %v2222 = vadd.f32 %v2144, %v2208
        %2223 = vset.pattern.permute.xlu0 23
        %2224 = vperm.xlu0 %2223, %v189
        %v2225 = vpop.permute.xlu0 %2224
        %2227 = vset.pattern.permute.xlu0 23
        %2228 = vperm.xlu0 %2227, %v190
        %v2229 = vpop.permute.xlu0 %2228
        %2231 = vset.pattern.permute.xlu0 23
        %2232 = vperm.xlu0 %2231, %v191
        %v2233 = vpop.permute.xlu0 %2232
        %2235 = vset.pattern.permute.xlu0 23
        %2236 = vperm.xlu0 %2235, %v192
        %v2237 = vpop.permute.xlu0 %2236
        %2239 = vset.pattern.permute.xlu0 23
        %2240 = vperm.xlu0 %2239, %v193
        %v2241 = vpop.permute.xlu0 %2240
        %2243 = vset.pattern.permute.xlu0 23
        %2244 = vperm.xlu0 %2243, %v194
        %v2245 = vpop.permute.xlu0 %2244
        %2247 = vset.pattern.permute.xlu0 23
        %2248 = vperm.xlu0 %2247, %v195
        %v2249 = vpop.permute.xlu0 %2248
        %v2251 = vlaneseq
        %v2252 = vshrl.u32 %v2251, 7
        %v2253 = vsub.s32 7, %v2252
        %v2254 = vrot.slane %v200, %v2253
        %v2255 = vlaneseq
        %v2256 = vshrl.u32 %v2255, 7
        %v2257 = vsub.s32 7, %v2256
        %v2258 = vrot.slane %v201, %v2257
        %v2259 = vsub.f32 %v2225, %v2254
        %v2260 = vsub.f32 %v2225, %v2258
        %v2261 = vsub.f32 %v2229, %v2254
        %v2262 = vsub.f32 %v2229, %v2258
        %v2263 = vsub.f32 %v2233, %v2254
        %v2264 = vsub.f32 %v2233, %v2258
        %v2265 = vsub.f32 %v2237, %v2254
        %v2266 = vsub.f32 %v2237, %v2258
        %v2267 = vsub.f32 %v2241, %v2254
        %v2268 = vsub.f32 %v2241, %v2258
        %v2269 = vsub.f32 %v2245, %v2254
        %v2270 = vsub.f32 %v2245, %v2258
        %v2271 = vsub.f32 %v2249, %v2254
        %v2272 = vsub.f32 %v2249, %v2258
        %v2273 = vand.u32 2147483647, %v2259
        %v2274 = vand.u32 2147483647, %v2260
        %v2275 = vand.u32 2147483647, %v2261
        %v2276 = vand.u32 2147483647, %v2262
        %v2277 = vand.u32 2147483647, %v2263
        %v2278 = vand.u32 2147483647, %v2264
        %v2279 = vand.u32 2147483647, %v2265
        %v2280 = vand.u32 2147483647, %v2266
        %v2281 = vand.u32 2147483647, %v2267
        %v2282 = vand.u32 2147483647, %v2268
        %v2283 = vand.u32 2147483647, %v2269
        %v2284 = vand.u32 2147483647, %v2270
        %v2285 = vand.u32 2147483647, %v2271
        %v2286 = vand.u32 2147483647, %v2272
        %v2287 = vadd.f32 %v2209, %v2273
        %v2288 = vadd.f32 %v2210, %v2274
        %v2289 = vadd.f32 %v2211, %v2275
        %v2290 = vadd.f32 %v2212, %v2276
        %v2291 = vadd.f32 %v2213, %v2277
        %v2292 = vadd.f32 %v2214, %v2278
        %v2293 = vadd.f32 %v2215, %v2279
        %v2294 = vadd.f32 %v2216, %v2280
        %v2295 = vadd.f32 %v2217, %v2281
        %v2296 = vadd.f32 %v2218, %v2282
        %v2297 = vadd.f32 %v2219, %v2283
        %v2298 = vadd.f32 %v2220, %v2284
        %v2299 = vadd.f32 %v2221, %v2285
        %v2300 = vadd.f32 %v2222, %v2286
        %2301 = vset.pattern.permute.xlu0 24
        %2302 = vperm.xlu0 %2301, %v189
        %v2303 = vpop.permute.xlu0 %2302
        %2305 = vset.pattern.permute.xlu0 24
        %2306 = vperm.xlu0 %2305, %v190
        %v2307 = vpop.permute.xlu0 %2306
        %2309 = vset.pattern.permute.xlu0 24
        %2310 = vperm.xlu0 %2309, %v191
        %v2311 = vpop.permute.xlu0 %2310
        %2313 = vset.pattern.permute.xlu0 24
        %2314 = vperm.xlu0 %2313, %v192
        %v2315 = vpop.permute.xlu0 %2314
        %2317 = vset.pattern.permute.xlu0 24
        %2318 = vperm.xlu0 %2317, %v193
        %v2319 = vpop.permute.xlu0 %2318
        %2321 = vset.pattern.permute.xlu0 24
        %2322 = vperm.xlu0 %2321, %v194
        %v2323 = vpop.permute.xlu0 %2322
        %2325 = vset.pattern.permute.xlu0 24
        %2326 = vperm.xlu0 %2325, %v195
        %v2327 = vpop.permute.xlu0 %2326
        %v2329 = vlaneseq
        %v2330 = vshrl.u32 %v2329, 7
        %v2331 = vsub.s32 0, %v2330
        %v2332 = vrot.slane %v202, %v2331
        %v2333 = vlaneseq
        %v2334 = vshrl.u32 %v2333, 7
        %v2335 = vsub.s32 0, %v2334
        %v2336 = vrot.slane %v203, %v2335
        %v2337 = vsub.f32 %v2303, %v2332
        %v2338 = vsub.f32 %v2303, %v2336
        %v2339 = vsub.f32 %v2307, %v2332
        %v2340 = vsub.f32 %v2307, %v2336
        %v2341 = vsub.f32 %v2311, %v2332
        %v2342 = vsub.f32 %v2311, %v2336
        %v2343 = vsub.f32 %v2315, %v2332
        %v2344 = vsub.f32 %v2315, %v2336
        %v2345 = vsub.f32 %v2319, %v2332
        %v2346 = vsub.f32 %v2319, %v2336
        %v2347 = vsub.f32 %v2323, %v2332
        %v2348 = vsub.f32 %v2323, %v2336
        %v2349 = vsub.f32 %v2327, %v2332
        %v2350 = vsub.f32 %v2327, %v2336
        %v2351 = vand.u32 2147483647, %v2337
        %v2352 = vand.u32 2147483647, %v2338
        %v2353 = vand.u32 2147483647, %v2339
        %v2354 = vand.u32 2147483647, %v2340
        %v2355 = vand.u32 2147483647, %v2341
        %v2356 = vand.u32 2147483647, %v2342
        %v2357 = vand.u32 2147483647, %v2343
        %v2358 = vand.u32 2147483647, %v2344
        %v2359 = vand.u32 2147483647, %v2345
        %v2360 = vand.u32 2147483647, %v2346
        %v2361 = vand.u32 2147483647, %v2347
        %v2362 = vand.u32 2147483647, %v2348
        %v2363 = vand.u32 2147483647, %v2349
        %v2364 = vand.u32 2147483647, %v2350
        %v2365 = vadd.f32 %v2287, %v2351
        %v2366 = vadd.f32 %v2288, %v2352
        %v2367 = vadd.f32 %v2289, %v2353
        %v2368 = vadd.f32 %v2290, %v2354
        %v2369 = vadd.f32 %v2291, %v2355
        %v2370 = vadd.f32 %v2292, %v2356
        %v2371 = vadd.f32 %v2293, %v2357
        %v2372 = vadd.f32 %v2294, %v2358
        %v2373 = vadd.f32 %v2295, %v2359
        %v2374 = vadd.f32 %v2296, %v2360
        %v2375 = vadd.f32 %v2297, %v2361
        %v2376 = vadd.f32 %v2298, %v2362
        %v2377 = vadd.f32 %v2299, %v2363
        %v2378 = vadd.f32 %v2300, %v2364
        %2379 = vset.pattern.permute.xlu0 25
        %2380 = vperm.xlu0 %2379, %v189
        %v2381 = vpop.permute.xlu0 %2380
        %2383 = vset.pattern.permute.xlu0 25
        %2384 = vperm.xlu0 %2383, %v190
        %v2385 = vpop.permute.xlu0 %2384
        %2387 = vset.pattern.permute.xlu0 25
        %2388 = vperm.xlu0 %2387, %v191
        %v2389 = vpop.permute.xlu0 %2388
        %2391 = vset.pattern.permute.xlu0 25
        %2392 = vperm.xlu0 %2391, %v192
        %v2393 = vpop.permute.xlu0 %2392
        %2395 = vset.pattern.permute.xlu0 25
        %2396 = vperm.xlu0 %2395, %v193
        %v2397 = vpop.permute.xlu0 %2396
        %2399 = vset.pattern.permute.xlu0 25
        %2400 = vperm.xlu0 %2399, %v194
        %v2401 = vpop.permute.xlu0 %2400
        %2403 = vset.pattern.permute.xlu0 25
        %2404 = vperm.xlu0 %2403, %v195
        %v2405 = vpop.permute.xlu0 %2404
        %v2407 = vlaneseq
        %v2408 = vshrl.u32 %v2407, 7
        %v2409 = vsub.s32 1, %v2408
        %v2410 = vrot.slane %v202, %v2409
        %v2411 = vlaneseq
        %v2412 = vshrl.u32 %v2411, 7
        %v2413 = vsub.s32 1, %v2412
        %v2414 = vrot.slane %v203, %v2413
        %v2415 = vsub.f32 %v2381, %v2410
        %v2416 = vsub.f32 %v2381, %v2414
        %v2417 = vsub.f32 %v2385, %v2410
        %v2418 = vsub.f32 %v2385, %v2414
        %v2419 = vsub.f32 %v2389, %v2410
        %v2420 = vsub.f32 %v2389, %v2414
        %v2421 = vsub.f32 %v2393, %v2410
        %v2422 = vsub.f32 %v2393, %v2414
        %v2423 = vsub.f32 %v2397, %v2410
        %v2424 = vsub.f32 %v2397, %v2414
        %v2425 = vsub.f32 %v2401, %v2410
        %v2426 = vsub.f32 %v2401, %v2414
        %v2427 = vsub.f32 %v2405, %v2410
        %v2428 = vsub.f32 %v2405, %v2414
        %v2429 = vand.u32 2147483647, %v2415
        %v2430 = vand.u32 2147483647, %v2416
        %v2431 = vand.u32 2147483647, %v2417
        %v2432 = vand.u32 2147483647, %v2418
        %v2433 = vand.u32 2147483647, %v2419
        %v2434 = vand.u32 2147483647, %v2420
        %v2435 = vand.u32 2147483647, %v2421
        %v2436 = vand.u32 2147483647, %v2422
        %v2437 = vand.u32 2147483647, %v2423
        %v2438 = vand.u32 2147483647, %v2424
        %v2439 = vand.u32 2147483647, %v2425
        %v2440 = vand.u32 2147483647, %v2426
        %v2441 = vand.u32 2147483647, %v2427
        %v2442 = vand.u32 2147483647, %v2428
        %v2443 = vadd.f32 %v2365, %v2429
        %v2444 = vadd.f32 %v2366, %v2430
        %v2445 = vadd.f32 %v2367, %v2431
        %v2446 = vadd.f32 %v2368, %v2432
        %v2447 = vadd.f32 %v2369, %v2433
        %v2448 = vadd.f32 %v2370, %v2434
        %v2449 = vadd.f32 %v2371, %v2435
        %v2450 = vadd.f32 %v2372, %v2436
        %v2451 = vadd.f32 %v2373, %v2437
        %v2452 = vadd.f32 %v2374, %v2438
        %v2453 = vadd.f32 %v2375, %v2439
        %v2454 = vadd.f32 %v2376, %v2440
        %v2455 = vadd.f32 %v2377, %v2441
        %v2456 = vadd.f32 %v2378, %v2442
        %2457 = vset.pattern.permute.xlu0 26
        %2458 = vperm.xlu0 %2457, %v189
        %v2459 = vpop.permute.xlu0 %2458
        %2461 = vset.pattern.permute.xlu0 26
        %2462 = vperm.xlu0 %2461, %v190
        %v2463 = vpop.permute.xlu0 %2462
        %2465 = vset.pattern.permute.xlu0 26
        %2466 = vperm.xlu0 %2465, %v191
        %v2467 = vpop.permute.xlu0 %2466
        %2469 = vset.pattern.permute.xlu0 26
        %2470 = vperm.xlu0 %2469, %v192
        %v2471 = vpop.permute.xlu0 %2470
        %2473 = vset.pattern.permute.xlu0 26
        %2474 = vperm.xlu0 %2473, %v193
        %v2475 = vpop.permute.xlu0 %2474
        %2477 = vset.pattern.permute.xlu0 26
        %2478 = vperm.xlu0 %2477, %v194
        %v2479 = vpop.permute.xlu0 %2478
        %2481 = vset.pattern.permute.xlu0 26
        %2482 = vperm.xlu0 %2481, %v195
        %v2483 = vpop.permute.xlu0 %2482
        %v2485 = vlaneseq
        %v2486 = vshrl.u32 %v2485, 7
        %v2487 = vsub.s32 2, %v2486
        %v2488 = vrot.slane %v202, %v2487
        %v2489 = vlaneseq
        %v2490 = vshrl.u32 %v2489, 7
        %v2491 = vsub.s32 2, %v2490
        %v2492 = vrot.slane %v203, %v2491
        %v2493 = vsub.f32 %v2459, %v2488
        %v2494 = vsub.f32 %v2459, %v2492
        %v2495 = vsub.f32 %v2463, %v2488
        %v2496 = vsub.f32 %v2463, %v2492
        %v2497 = vsub.f32 %v2467, %v2488
        %v2498 = vsub.f32 %v2467, %v2492
        %v2499 = vsub.f32 %v2471, %v2488
        %v2500 = vsub.f32 %v2471, %v2492
        %v2501 = vsub.f32 %v2475, %v2488
        %v2502 = vsub.f32 %v2475, %v2492
        %v2503 = vsub.f32 %v2479, %v2488
        %v2504 = vsub.f32 %v2479, %v2492
        %v2505 = vsub.f32 %v2483, %v2488
        %v2506 = vsub.f32 %v2483, %v2492
        %v2507 = vand.u32 2147483647, %v2493
        %v2508 = vand.u32 2147483647, %v2494
        %v2509 = vand.u32 2147483647, %v2495
        %v2510 = vand.u32 2147483647, %v2496
        %v2511 = vand.u32 2147483647, %v2497
        %v2512 = vand.u32 2147483647, %v2498
        %v2513 = vand.u32 2147483647, %v2499
        %v2514 = vand.u32 2147483647, %v2500
        %v2515 = vand.u32 2147483647, %v2501
        %v2516 = vand.u32 2147483647, %v2502
        %v2517 = vand.u32 2147483647, %v2503
        %v2518 = vand.u32 2147483647, %v2504
        %v2519 = vand.u32 2147483647, %v2505
        %v2520 = vand.u32 2147483647, %v2506
        %v2521 = vadd.f32 %v2443, %v2507
        %v2522 = vadd.f32 %v2444, %v2508
        %v2523 = vadd.f32 %v2445, %v2509
        %v2524 = vadd.f32 %v2446, %v2510
        %v2525 = vadd.f32 %v2447, %v2511
        %v2526 = vadd.f32 %v2448, %v2512
        %v2527 = vadd.f32 %v2449, %v2513
        %v2528 = vadd.f32 %v2450, %v2514
        %v2529 = vadd.f32 %v2451, %v2515
        %v2530 = vadd.f32 %v2452, %v2516
        %v2531 = vadd.f32 %v2453, %v2517
        %v2532 = vadd.f32 %v2454, %v2518
        %v2533 = vadd.f32 %v2455, %v2519
        %v2534 = vadd.f32 %v2456, %v2520
        %2535 = vset.pattern.permute.xlu0 27
        %2536 = vperm.xlu0 %2535, %v189
        %v2537 = vpop.permute.xlu0 %2536
        %2539 = vset.pattern.permute.xlu0 27
        %2540 = vperm.xlu0 %2539, %v190
        %v2541 = vpop.permute.xlu0 %2540
        %2543 = vset.pattern.permute.xlu0 27
        %2544 = vperm.xlu0 %2543, %v191
        %v2545 = vpop.permute.xlu0 %2544
        %2547 = vset.pattern.permute.xlu0 27
        %2548 = vperm.xlu0 %2547, %v192
        %v2549 = vpop.permute.xlu0 %2548
        %2551 = vset.pattern.permute.xlu0 27
        %2552 = vperm.xlu0 %2551, %v193
        %v2553 = vpop.permute.xlu0 %2552
        %2555 = vset.pattern.permute.xlu0 27
        %2556 = vperm.xlu0 %2555, %v194
        %v2557 = vpop.permute.xlu0 %2556
        %2559 = vset.pattern.permute.xlu0 27
        %2560 = vperm.xlu0 %2559, %v195
        %v2561 = vpop.permute.xlu0 %2560
        %v2563 = vlaneseq
        %v2564 = vshrl.u32 %v2563, 7
        %v2565 = vsub.s32 3, %v2564
        %v2566 = vrot.slane %v202, %v2565
        %v2567 = vlaneseq
        %v2568 = vshrl.u32 %v2567, 7
        %v2569 = vsub.s32 3, %v2568
        %v2570 = vrot.slane %v203, %v2569
        %v2571 = vsub.f32 %v2537, %v2566
        %v2572 = vsub.f32 %v2537, %v2570
        %v2573 = vsub.f32 %v2541, %v2566
        %v2574 = vsub.f32 %v2541, %v2570
        %v2575 = vsub.f32 %v2545, %v2566
        %v2576 = vsub.f32 %v2545, %v2570
        %v2577 = vsub.f32 %v2549, %v2566
        %v2578 = vsub.f32 %v2549, %v2570
        %v2579 = vsub.f32 %v2553, %v2566
        %v2580 = vsub.f32 %v2553, %v2570
        %v2581 = vsub.f32 %v2557, %v2566
        %v2582 = vsub.f32 %v2557, %v2570
        %v2583 = vsub.f32 %v2561, %v2566
        %v2584 = vsub.f32 %v2561, %v2570
        %v2585 = vand.u32 2147483647, %v2571
        %v2586 = vand.u32 2147483647, %v2572
        %v2587 = vand.u32 2147483647, %v2573
        %v2588 = vand.u32 2147483647, %v2574
        %v2589 = vand.u32 2147483647, %v2575
        %v2590 = vand.u32 2147483647, %v2576
        %v2591 = vand.u32 2147483647, %v2577
        %v2592 = vand.u32 2147483647, %v2578
        %v2593 = vand.u32 2147483647, %v2579
        %v2594 = vand.u32 2147483647, %v2580
        %v2595 = vand.u32 2147483647, %v2581
        %v2596 = vand.u32 2147483647, %v2582
        %v2597 = vand.u32 2147483647, %v2583
        %v2598 = vand.u32 2147483647, %v2584
        %v2599 = vadd.f32 %v2521, %v2585
        %v2600 = vadd.f32 %v2522, %v2586
        %v2601 = vadd.f32 %v2523, %v2587
        %v2602 = vadd.f32 %v2524, %v2588
        %v2603 = vadd.f32 %v2525, %v2589
        %v2604 = vadd.f32 %v2526, %v2590
        %v2605 = vadd.f32 %v2527, %v2591
        %v2606 = vadd.f32 %v2528, %v2592
        %v2607 = vadd.f32 %v2529, %v2593
        %v2608 = vadd.f32 %v2530, %v2594
        %v2609 = vadd.f32 %v2531, %v2595
        %v2610 = vadd.f32 %v2532, %v2596
        %v2611 = vadd.f32 %v2533, %v2597
        %v2612 = vadd.f32 %v2534, %v2598
        %2613 = vset.pattern.permute.xlu0 28
        %2614 = vperm.xlu0 %2613, %v189
        %v2615 = vpop.permute.xlu0 %2614
        %2617 = vset.pattern.permute.xlu0 28
        %2618 = vperm.xlu0 %2617, %v190
        %v2619 = vpop.permute.xlu0 %2618
        %2621 = vset.pattern.permute.xlu0 28
        %2622 = vperm.xlu0 %2621, %v191
        %v2623 = vpop.permute.xlu0 %2622
        %2625 = vset.pattern.permute.xlu0 28
        %2626 = vperm.xlu0 %2625, %v192
        %v2627 = vpop.permute.xlu0 %2626
        %2629 = vset.pattern.permute.xlu0 28
        %2630 = vperm.xlu0 %2629, %v193
        %v2631 = vpop.permute.xlu0 %2630
        %2633 = vset.pattern.permute.xlu0 28
        %2634 = vperm.xlu0 %2633, %v194
        %v2635 = vpop.permute.xlu0 %2634
        %2637 = vset.pattern.permute.xlu0 28
        %2638 = vperm.xlu0 %2637, %v195
        %v2639 = vpop.permute.xlu0 %2638
        %v2641 = vlaneseq
        %v2642 = vshrl.u32 %v2641, 7
        %v2643 = vsub.s32 4, %v2642
        %v2644 = vrot.slane %v202, %v2643
        %v2645 = vlaneseq
        %v2646 = vshrl.u32 %v2645, 7
        %v2647 = vsub.s32 4, %v2646
        %v2648 = vrot.slane %v203, %v2647
        %v2649 = vsub.f32 %v2615, %v2644
        %v2650 = vsub.f32 %v2615, %v2648
        %v2651 = vsub.f32 %v2619, %v2644
        %v2652 = vsub.f32 %v2619, %v2648
        %v2653 = vsub.f32 %v2623, %v2644
        %v2654 = vsub.f32 %v2623, %v2648
        %v2655 = vsub.f32 %v2627, %v2644
        %v2656 = vsub.f32 %v2627, %v2648
        %v2657 = vsub.f32 %v2631, %v2644
        %v2658 = vsub.f32 %v2631, %v2648
        %v2659 = vsub.f32 %v2635, %v2644
        %v2660 = vsub.f32 %v2635, %v2648
        %v2661 = vsub.f32 %v2639, %v2644
        %v2662 = vsub.f32 %v2639, %v2648
        %v2663 = vand.u32 2147483647, %v2649
        %v2664 = vand.u32 2147483647, %v2650
        %v2665 = vand.u32 2147483647, %v2651
        %v2666 = vand.u32 2147483647, %v2652
        %v2667 = vand.u32 2147483647, %v2653
        %v2668 = vand.u32 2147483647, %v2654
        %v2669 = vand.u32 2147483647, %v2655
        %v2670 = vand.u32 2147483647, %v2656
        %v2671 = vand.u32 2147483647, %v2657
        %v2672 = vand.u32 2147483647, %v2658
        %v2673 = vand.u32 2147483647, %v2659
        %v2674 = vand.u32 2147483647, %v2660
        %v2675 = vand.u32 2147483647, %v2661
        %v2676 = vand.u32 2147483647, %v2662
        %v2677 = vadd.f32 %v2599, %v2663
        %v2678 = vadd.f32 %v2600, %v2664
        %v2679 = vadd.f32 %v2601, %v2665
        %v2680 = vadd.f32 %v2602, %v2666
        %v2681 = vadd.f32 %v2603, %v2667
        %v2682 = vadd.f32 %v2604, %v2668
        %v2683 = vadd.f32 %v2605, %v2669
        %v2684 = vadd.f32 %v2606, %v2670
        %v2685 = vadd.f32 %v2607, %v2671
        %v2686 = vadd.f32 %v2608, %v2672
        %v2687 = vadd.f32 %v2609, %v2673
        %v2688 = vadd.f32 %v2610, %v2674
        %v2689 = vadd.f32 %v2611, %v2675
        %v2690 = vadd.f32 %v2612, %v2676
        %2691 = vset.pattern.permute.xlu0 29
        %2692 = vperm.xlu0 %2691, %v189
        %v2693 = vpop.permute.xlu0 %2692
        %2695 = vset.pattern.permute.xlu0 29
        %2696 = vperm.xlu0 %2695, %v190
        %v2697 = vpop.permute.xlu0 %2696
        %2699 = vset.pattern.permute.xlu0 29
        %2700 = vperm.xlu0 %2699, %v191
        %v2701 = vpop.permute.xlu0 %2700
        %2703 = vset.pattern.permute.xlu0 29
        %2704 = vperm.xlu0 %2703, %v192
        %v2705 = vpop.permute.xlu0 %2704
        %2707 = vset.pattern.permute.xlu0 29
        %2708 = vperm.xlu0 %2707, %v193
        %v2709 = vpop.permute.xlu0 %2708
        %2711 = vset.pattern.permute.xlu0 29
        %2712 = vperm.xlu0 %2711, %v194
        %v2713 = vpop.permute.xlu0 %2712
        %2715 = vset.pattern.permute.xlu0 29
        %2716 = vperm.xlu0 %2715, %v195
        %v2717 = vpop.permute.xlu0 %2716
        %v2719 = vlaneseq
        %v2720 = vshrl.u32 %v2719, 7
        %v2721 = vsub.s32 5, %v2720
        %v2722 = vrot.slane %v202, %v2721
        %v2723 = vlaneseq
        %v2724 = vshrl.u32 %v2723, 7
        %v2725 = vsub.s32 5, %v2724
        %v2726 = vrot.slane %v203, %v2725
        %v2727 = vsub.f32 %v2693, %v2722
        %v2728 = vsub.f32 %v2693, %v2726
        %v2729 = vsub.f32 %v2697, %v2722
        %v2730 = vsub.f32 %v2697, %v2726
        %v2731 = vsub.f32 %v2701, %v2722
        %v2732 = vsub.f32 %v2701, %v2726
        %v2733 = vsub.f32 %v2705, %v2722
        %v2734 = vsub.f32 %v2705, %v2726
        %v2735 = vsub.f32 %v2709, %v2722
        %v2736 = vsub.f32 %v2709, %v2726
        %v2737 = vsub.f32 %v2713, %v2722
        %v2738 = vsub.f32 %v2713, %v2726
        %v2739 = vsub.f32 %v2717, %v2722
        %v2740 = vsub.f32 %v2717, %v2726
        %v2741 = vand.u32 2147483647, %v2727
        %v2742 = vand.u32 2147483647, %v2728
        %v2743 = vand.u32 2147483647, %v2729
        %v2744 = vand.u32 2147483647, %v2730
        %v2745 = vand.u32 2147483647, %v2731
        %v2746 = vand.u32 2147483647, %v2732
        %v2747 = vand.u32 2147483647, %v2733
        %v2748 = vand.u32 2147483647, %v2734
        %v2749 = vand.u32 2147483647, %v2735
        %v2750 = vand.u32 2147483647, %v2736
        %v2751 = vand.u32 2147483647, %v2737
        %v2752 = vand.u32 2147483647, %v2738
        %v2753 = vand.u32 2147483647, %v2739
        %v2754 = vand.u32 2147483647, %v2740
        %v2755 = vadd.f32 %v2677, %v2741
        %v2756 = vadd.f32 %v2678, %v2742
        %v2757 = vadd.f32 %v2679, %v2743
        %v2758 = vadd.f32 %v2680, %v2744
        %v2759 = vadd.f32 %v2681, %v2745
        %v2760 = vadd.f32 %v2682, %v2746
        %v2761 = vadd.f32 %v2683, %v2747
        %v2762 = vadd.f32 %v2684, %v2748
        %v2763 = vadd.f32 %v2685, %v2749
        %v2764 = vadd.f32 %v2686, %v2750
        %v2765 = vadd.f32 %v2687, %v2751
        %v2766 = vadd.f32 %v2688, %v2752
        %v2767 = vadd.f32 %v2689, %v2753
        %v2768 = vadd.f32 %v2690, %v2754
        %2769 = vset.pattern.permute.xlu0 30
        %2770 = vperm.xlu0 %2769, %v189
        %v2771 = vpop.permute.xlu0 %2770
        %2773 = vset.pattern.permute.xlu0 30
        %2774 = vperm.xlu0 %2773, %v190
        %v2775 = vpop.permute.xlu0 %2774
        %2777 = vset.pattern.permute.xlu0 30
        %2778 = vperm.xlu0 %2777, %v191
        %v2779 = vpop.permute.xlu0 %2778
        %2781 = vset.pattern.permute.xlu0 30
        %2782 = vperm.xlu0 %2781, %v192
        %v2783 = vpop.permute.xlu0 %2782
        %2785 = vset.pattern.permute.xlu0 30
        %2786 = vperm.xlu0 %2785, %v193
        %v2787 = vpop.permute.xlu0 %2786
        %2789 = vset.pattern.permute.xlu0 30
        %2790 = vperm.xlu0 %2789, %v194
        %v2791 = vpop.permute.xlu0 %2790
        %2793 = vset.pattern.permute.xlu0 30
        %2794 = vperm.xlu0 %2793, %v195
        %v2795 = vpop.permute.xlu0 %2794
        %v2797 = vlaneseq
        %v2798 = vshrl.u32 %v2797, 7
        %v2799 = vsub.s32 6, %v2798
        %v2800 = vrot.slane %v202, %v2799
        %v2801 = vlaneseq
        %v2802 = vshrl.u32 %v2801, 7
        %v2803 = vsub.s32 6, %v2802
        %v2804 = vrot.slane %v203, %v2803
        %v2805 = vsub.f32 %v2771, %v2800
        %v2806 = vsub.f32 %v2771, %v2804
        %v2807 = vsub.f32 %v2775, %v2800
        %v2808 = vsub.f32 %v2775, %v2804
        %v2809 = vsub.f32 %v2779, %v2800
        %v2810 = vsub.f32 %v2779, %v2804
        %v2811 = vsub.f32 %v2783, %v2800
        %v2812 = vsub.f32 %v2783, %v2804
        %v2813 = vsub.f32 %v2787, %v2800
        %v2814 = vsub.f32 %v2787, %v2804
        %v2815 = vsub.f32 %v2791, %v2800
        %v2816 = vsub.f32 %v2791, %v2804
        %v2817 = vsub.f32 %v2795, %v2800
        %v2818 = vsub.f32 %v2795, %v2804
        %v2819 = vand.u32 2147483647, %v2805
        %v2820 = vand.u32 2147483647, %v2806
        %v2821 = vand.u32 2147483647, %v2807
        %v2822 = vand.u32 2147483647, %v2808
        %v2823 = vand.u32 2147483647, %v2809
        %v2824 = vand.u32 2147483647, %v2810
        %v2825 = vand.u32 2147483647, %v2811
        %v2826 = vand.u32 2147483647, %v2812
        %v2827 = vand.u32 2147483647, %v2813
        %v2828 = vand.u32 2147483647, %v2814
        %v2829 = vand.u32 2147483647, %v2815
        %v2830 = vand.u32 2147483647, %v2816
        %v2831 = vand.u32 2147483647, %v2817
        %v2832 = vand.u32 2147483647, %v2818
        %v2833 = vadd.f32 %v2755, %v2819
        %v2834 = vadd.f32 %v2756, %v2820
        %v2835 = vadd.f32 %v2757, %v2821
        %v2836 = vadd.f32 %v2758, %v2822
        %v2837 = vadd.f32 %v2759, %v2823
        %v2838 = vadd.f32 %v2760, %v2824
        %v2839 = vadd.f32 %v2761, %v2825
        %v2840 = vadd.f32 %v2762, %v2826
        %v2841 = vadd.f32 %v2763, %v2827
        %v2842 = vadd.f32 %v2764, %v2828
        %v2843 = vadd.f32 %v2765, %v2829
        %v2844 = vadd.f32 %v2766, %v2830
        %v2845 = vadd.f32 %v2767, %v2831
        %v2846 = vadd.f32 %v2768, %v2832
        %2847 = vset.pattern.permute.xlu0 31
        %2848 = vperm.xlu0 %2847, %v189
        %v2849 = vpop.permute.xlu0 %2848
        %2851 = vset.pattern.permute.xlu0 31
        %2852 = vperm.xlu0 %2851, %v190
        %v2853 = vpop.permute.xlu0 %2852
        %2855 = vset.pattern.permute.xlu0 31
        %2856 = vperm.xlu0 %2855, %v191
        %v2857 = vpop.permute.xlu0 %2856
        %2859 = vset.pattern.permute.xlu0 31
        %2860 = vperm.xlu0 %2859, %v192
        %v2861 = vpop.permute.xlu0 %2860
        %2863 = vset.pattern.permute.xlu0 31
        %2864 = vperm.xlu0 %2863, %v193
        %v2865 = vpop.permute.xlu0 %2864
        %2867 = vset.pattern.permute.xlu0 31
        %2868 = vperm.xlu0 %2867, %v194
        %v2869 = vpop.permute.xlu0 %2868
        %2871 = vset.pattern.permute.xlu0 31
        %2872 = vperm.xlu0 %2871, %v195
        %v2873 = vpop.permute.xlu0 %2872
        %v2875 = vlaneseq
        %v2876 = vshrl.u32 %v2875, 7
        %v2877 = vsub.s32 7, %v2876
        %v2878 = vrot.slane %v202, %v2877
        %v2879 = vlaneseq
        %v2880 = vshrl.u32 %v2879, 7
        %v2881 = vsub.s32 7, %v2880
        %v2882 = vrot.slane %v203, %v2881
        %v2883 = vsub.f32 %v2849, %v2878
        %v2884 = vsub.f32 %v2849, %v2882
        %v2885 = vsub.f32 %v2853, %v2878
        %v2886 = vsub.f32 %v2853, %v2882
        %v2887 = vsub.f32 %v2857, %v2878
        %v2888 = vsub.f32 %v2857, %v2882
        %v2889 = vsub.f32 %v2861, %v2878
        %v2890 = vsub.f32 %v2861, %v2882
        %v2891 = vsub.f32 %v2865, %v2878
        %v2892 = vsub.f32 %v2865, %v2882
        %v2893 = vsub.f32 %v2869, %v2878
        %v2894 = vsub.f32 %v2869, %v2882
        %v2895 = vsub.f32 %v2873, %v2878
        %v2896 = vsub.f32 %v2873, %v2882
        %v2897 = vand.u32 2147483647, %v2883
        %v2898 = vand.u32 2147483647, %v2884
        %v2899 = vand.u32 2147483647, %v2885
        %v2900 = vand.u32 2147483647, %v2886
        %v2901 = vand.u32 2147483647, %v2887
        %v2902 = vand.u32 2147483647, %v2888
        %v2903 = vand.u32 2147483647, %v2889
        %v2904 = vand.u32 2147483647, %v2890
        %v2905 = vand.u32 2147483647, %v2891
        %v2906 = vand.u32 2147483647, %v2892
        %v2907 = vand.u32 2147483647, %v2893
        %v2908 = vand.u32 2147483647, %v2894
        %v2909 = vand.u32 2147483647, %v2895
        %v2910 = vand.u32 2147483647, %v2896
        %v2911 = vadd.f32 %v2833, %v2897
        %v2912 = vadd.f32 %v2834, %v2898
        %v2913 = vadd.f32 %v2835, %v2899
        %v2914 = vadd.f32 %v2836, %v2900
        %v2915 = vadd.f32 %v2837, %v2901
        %v2916 = vadd.f32 %v2838, %v2902
        %v2917 = vadd.f32 %v2839, %v2903
        %v2918 = vadd.f32 %v2840, %v2904
        %v2919 = vadd.f32 %v2841, %v2905
        %v2920 = vadd.f32 %v2842, %v2906
        %v2921 = vadd.f32 %v2843, %v2907
        %v2922 = vadd.f32 %v2844, %v2908
        %v2923 = vadd.f32 %v2845, %v2909
        %v2924 = vadd.f32 %v2846, %v2910
        %s2925 = sld [smem:[#allocation3]]
        %v2926 = vstv %s2925
        %v2927 = vmul.f32 %v415, %v2926
        %v2928 = vmul.f32 %v416, %v2926
        %v2929 = vmul.f32 %v417, %v2926
        %v2930 = vmul.f32 %v418, %v2926
        %v2931 = vmul.f32 %v419, %v2926
        %v2932 = vmul.f32 %v420, %v2926
        %v2933 = vmul.f32 %v421, %v2926
        %v2934 = vmul.f32 %v422, %v2926
        %v2935 = vmul.f32 %v423, %v2926
        %v2936 = vmul.f32 %v424, %v2926
        %v2937 = vmul.f32 %v425, %v2926
        %v2938 = vmul.f32 %v426, %v2926
        %v2939 = vmul.f32 %v427, %v2926
        %v2940 = vmul.f32 %v428, %v2926
        %s2941 = sld [smem:[#allocation3 + $0x1]]
        %v2942 = vstv %s2941
        %v2943 = vmul.f32 %v429, %v2942
        %v2944 = vmul.f32 %v430, %v2942
        %v2945 = vmul.f32 %v431, %v2942
        %v2946 = vmul.f32 %v432, %v2942
        %v2947 = vmul.f32 %v433, %v2942
        %v2948 = vmul.f32 %v434, %v2942
        %v2949 = vmul.f32 %v435, %v2942
        %v2950 = vmul.f32 %v436, %v2942
        %v2951 = vmul.f32 %v437, %v2942
        %v2952 = vmul.f32 %v438, %v2942
        %v2953 = vmul.f32 %v439, %v2942
        %v2954 = vmul.f32 %v440, %v2942
        %v2955 = vmul.f32 %v441, %v2942
        %v2956 = vmul.f32 %v442, %v2942
        %s2957 = sld [smem:[#allocation3 + $0x2]]
        %v2958 = vstv %s2957
        %v2959 = vmul.f32 %v2911, %v2958
        %v2960 = vmul.f32 %v2912, %v2958
        %v2961 = vmul.f32 %v2913, %v2958
        %v2962 = vmul.f32 %v2914, %v2958
        %v2963 = vmul.f32 %v2915, %v2958
        %v2964 = vmul.f32 %v2916, %v2958
        %v2965 = vmul.f32 %v2917, %v2958
        %v2966 = vmul.f32 %v2918, %v2958
        %v2967 = vmul.f32 %v2919, %v2958
        %v2968 = vmul.f32 %v2920, %v2958
        %v2969 = vmul.f32 %v2921, %v2958
        %v2970 = vmul.f32 %v2922, %v2958
        %v2971 = vmul.f32 %v2923, %v2958
        %v2972 = vmul.f32 %v2924, %v2958
        %v2973 = vadd.f32 %v2927, %v2943
        %v2974 = vadd.f32 %v2928, %v2944
        %v2975 = vadd.f32 %v2929, %v2945
        %v2976 = vadd.f32 %v2930, %v2946
        %v2977 = vadd.f32 %v2931, %v2947
        %v2978 = vadd.f32 %v2932, %v2948
        %v2979 = vadd.f32 %v2933, %v2949
        %v2980 = vadd.f32 %v2934, %v2950
        %v2981 = vadd.f32 %v2935, %v2951
        %v2982 = vadd.f32 %v2936, %v2952
        %v2983 = vadd.f32 %v2937, %v2953
        %v2984 = vadd.f32 %v2938, %v2954
        %v2985 = vadd.f32 %v2939, %v2955
        %v2986 = vadd.f32 %v2940, %v2956
        %v2987 = vadd.f32 %v2973, %v2959
        %v2988 = vadd.f32 %v2974, %v2960
        %v2989 = vadd.f32 %v2975, %v2961
        %v2990 = vadd.f32 %v2976, %v2962
        %v2991 = vadd.f32 %v2977, %v2963
        %v2992 = vadd.f32 %v2978, %v2964
        %v2993 = vadd.f32 %v2979, %v2965
        %v2994 = vadd.f32 %v2980, %v2966
        %v2995 = vadd.f32 %v2981, %v2967
        %v2996 = vadd.f32 %v2982, %v2968
        %v2997 = vadd.f32 %v2983, %v2969
        %v2998 = vadd.f32 %v2984, %v2970
        %v2999 = vadd.f32 %v2985, %v2971
        %v3000 = vadd.f32 %v2986, %v2972
        %3001 = vst [vmem:[%s174] sm:$0xff] %v2987
        %3002 = vst [vmem:[%s174 + $0x8] sm:$0xff] %v2988
        %3003 = vst [vmem:[%s174 + $0x10] sm:$0xff] %v2989
        %3004 = vst [vmem:[%s174 + $0x18] sm:$0xff] %v2990
        %3005 = vst [vmem:[%s174 + $0x20] sm:$0xff] %v2991
        %3006 = vst [vmem:[%s174 + $0x28] sm:$0xff] %v2992
        %3007 = vst [vmem:[%s174 + $0x30] sm:$0xff] %v2993
        %3008 = vst [vmem:[%s174 + $0x38] sm:$0xff] %v2994
        %3009 = vst [vmem:[%s174 + $0x40] sm:$0xff] %v2995
        %3010 = vst [vmem:[%s174 + $0x48] sm:$0xff] %v2996
        %3011 = vst [vmem:[%s174 + $0x50] sm:$0xff] %v2997
        %3012 = vst [vmem:[%s174 + $0x58] sm:$0xff] %v2998
        %3013 = vst [vmem:[%s174 + $0x60] sm:$0xff] %v2999
        %3014 = vst [vmem:[%s174 + $0x68] sm:$0xff] %v3000
        %s3015 = sand.u32 %s97, 1
        %s3016 = scalar_lea.sflag [#allocation5], %s3015
        %s3017 = sand.u32 %s97, 1
        %s3018 = smul.addr %s3017, 112
        %s3019 = scalar_lea.vmem [#allocation4], %s3018
        // Predicated region
        $region29: #{tpu_custom_call.1} parent=27 // pred_check
          %p3020 = pneg %p107
        $region30: #{tpu_custom_call.1} parent=27 // pred_check_branch
          %3022 = sbr.rel (%p3020) target = $region32
        $region31: #{tpu_custom_call.1} parent=27 // pred_region
          %s3023 = smul.u32 7, %s27
          %s3024 = smul.u32 2, %s28
          %s3026 = ssub.s32 1792, 1792
          %3027 = vsyncadd %s3016, %s3026
          %s3028 = smul.addr %s3023, 2
          %s3029 = sadd.s32 %s3024, %s3028
          %s3030 = smul.addr %s3029, 128
          %s3031 = scalar_lea.hbm %s3, %s3030
          %s3032 = sshll.u32 %s3019, 4
          %s3033 = int_to_ptr.vmem [resolvable:$true] %s3032
          %3038 = dma.vmem_to_hbm [thread:$0]  %s3033, 1792, %s3031, %s3016, 256, 256, 16
        $region32: #{tpu_custom_call.1} parent=27 // pred_fallthru
          _
      $region28: #{tpu_custom_call.1} parent=5 // pred_fallthru
        _
      %p3039 = scmp.le.s32.totalorder 2, %s18
      // Predicated region
      $region33: #{tpu_custom_call.1} parent=5 // pred_check
        %p3040 = pneg %p3039
      $region34: #{tpu_custom_call.1} parent=5 // pred_check_branch
        %3042 = sbr.rel (%p3040) target = $region36
      $region35: #{tpu_custom_call.1} parent=5 // pred_region
        %s3043 = ssub.s32 %s18, 2
        // Predicated region
        $region37: #{tpu_custom_call.1} parent=35 // pred_check
          %p3044 = pneg %p113
        $region38: #{tpu_custom_call.1} parent=35 // pred_check_branch
          %3046 = sbr.rel (%p3044) target = $region40
        $region39: #{tpu_custom_call.1} parent=35 // pred_region
          %s3047 = sand.u32 %s98, 1
          %s3048 = scalar_lea.sflag [#allocation5], %s3047
          %s3049 = sand.u32 %s98, 1
          %s3050 = smul.addr %s3049, 112
          %s3051 = scalar_lea.vmem [#allocation4], %s3050
          %3052 = dma.done %s3048, 1792
        $region40: #{tpu_custom_call.1} parent=35 // pred_fallthru
          _
      $region36: #{tpu_custom_call.1} parent=5 // pred_fallthru
        _
    $region6: #{tpu_custom_call.1} parent=1 // loop_footer
      %s22 = sadd.s32 1, %s18
    $region7: #{tpu_custom_call.1} parent=1 // loop_footer_branch
      %17 = sbr.rel target = $region3
    $region8: #{tpu_custom_call.1} parent=1 // loop_exit
      _
    %3053 = vsyncpa [#allocation5], 1
    %s3054 = scalar_lea.sflag [#allocation5], 1
    %3055 = vsyncpa %s3054, 1

</llo_original>
